<compile_context>
chip_gen: v5e
topology: v5e:2x2
jax: 0.10.0
libtpu: 0.0.40
codegen_flags: <defaults>
</compile_context>

<pallas_src>
import jax
import jax.numpy as jnp
from jax import lax
from jax.experimental import pallas as pl
from jax.experimental.pallas import tpu as pltpu


# ---------------------------------------------------------------------------
# Pallas kernel (fused: all GRU layers + logits head, single invocation)
# ---------------------------------------------------------------------------
def _sigmoid(x):
    # sigmoid(x) == 0.5 * tanh(0.5 * x) + 0.5  -> single EUP op.
    return 0.5 * jnp.tanh(0.5 * x) + 0.5


def _gru_cell(gi_t, h, whT, bhn, H):
    """One GRU update.  gi_t: (B,3H) f32 input gates (biases folded, except b_hn).
    whT: (H,3H) fused recurrent weight [W_hr^T|W_hz^T|W_hn^T].  h: (B,H) f32."""
    gh = jnp.dot(h.astype(whT.dtype), whT, preferred_element_type=jnp.float32)
    r = _sigmoid(gi_t[:, :H] + gh[:, :H])
    z = _sigmoid(gi_t[:, H:2 * H] + gh[:, H:2 * H])
    n = jnp.tanh(gi_t[:, 2 * H:] + r * (gh[:, 2 * H:] + bhn))
    return (1.0 - z) * n + z * h


def _make_fused_kernel(depth, T, B, H, unroll):
    """Kernel ref layout (inputs..., output, scratch):
      inputs:
        gi0                      : (T, B, 3H) precomputed layer-0 input gates
        layer 0: whT (H,3H), b_hn (1,H)
        layers 1..depth-1: wiT (H,3H), whT (H,3H), b_i (1,3H), b_hn (1,H)
        head: wlogT (H,NC), blog (1,NC)
      output: logits (B, NC)
      scratch (only if depth>1): seq (T,B,H) VMEM -- inter-layer hidden sequence,
        overwritten in place layer by layer.
    """
    n_inputs = 1 + 2 + 4 * (depth - 1) + 2

    def kernel(*refs):
        ins = refs[:n_inputs]
        out_ref = refs[n_inputs]
        seq_ref = refs[n_inputs + 1] if depth > 1 else None

        gi0_ref = ins[0]
        pos = 1
        h = jnp.zeros((B, H), jnp.float32)

        for layer in range(depth):
            is_last = layer == depth - 1
            if layer == 0:
                whT = ins[pos][...]
                # Hoist bias broadcast out of the time loop (no CSE of broadcasts).
                bhn = jnp.broadcast_to(ins[pos + 1][...], (B, H))
                pos += 2

                def step(t, h_c, whT=whT, bhn=bhn, is_last=is_last):
                    gi_t = gi0_ref[t].astype(jnp.float32)
                    h_new = _gru_cell(gi_t, h_c, whT, bhn, H)
                    if not is_last:
                        seq_ref[t] = h_new.astype(seq_ref.dtype)
                    return h_new
            else:
                wiT = ins[pos][...]
                whT = ins[pos + 1][...]
                b_i = jnp.broadcast_to(ins[pos + 2][...], (B, 3 * H))
                bhn = jnp.broadcast_to(ins[pos + 3][...], (B, H))
                pos += 4

                def step(t, h_c, wiT=wiT, whT=whT, b_i=b_i, bhn=bhn,
                         is_last=is_last):
                    x_t = seq_ref[t]  # previous layer's hidden at time t (VMEM)
                    gi_t = jnp.dot(x_t, wiT,
                                   preferred_element_type=jnp.float32) + b_i
                    h_new = _gru_cell(gi_t, h_c, whT, bhn, H)
                    if not is_last:
                        seq_ref[t] = h_new.astype(seq_ref.dtype)
                    return h_new

            h = lax.fori_loop(0, T, step, jnp.zeros((B, H), jnp.float32),
                              unroll=unroll)

        # Fused logits head on the last layer's final hidden state.
        wlog = ins[pos][...]
        blog = ins[pos + 1][...]
        out_ref[...] = (jnp.dot(h, wlog, preferred_element_type=jnp.float32)
                        + blog).astype(out_ref.dtype)

    return kernel, n_inputs


# ---------------------------------------------------------------------------
# Host-side parameter preparation (done once, outside the per-call forward)
# ---------------------------------------------------------------------------
def prepare_params(params, compute_dtype=jnp.float32):
    """Pre-transpose / pre-fuse / bias-fold PyTorch-layout params into kernel layout.

    compute_dtype: dtype of matmul operands (use jnp.bfloat16 for ~2x MXU throughput
    and half the VMEM/HBM traffic on v6e/v7x).  Accumulation stays f32 either way.
    """
    layers = params["gru_layers"]
    H = layers[0]["w_hh"].shape[1]
    mm = compute_dtype

    l0 = layers[0]
    b_ih0, b_hh0 = l0["b_ih"], l0["b_hh"]
    # Layer-0 gi bias: fold b_ih (+ b_hh for r,z); keep b_hn separate (inside r*(...)).
    gi_bias0 = jnp.concatenate([b_ih0[:2 * H] + b_hh0[:2 * H], b_ih0[2 * H:]])

    # Layer 0 kernel params: fused recurrent weight + b_hn.
    layer0 = [l0["w_hh"].T.astype(mm),                        # (H,3H) [r|z|n]
              b_hh0[2 * H:][None, :].astype(jnp.float32)]     # (1,H) b_hn
    upper = []
    for layer in layers[1:]:
        b_ih, b_hh = layer["b_ih"], layer["b_hh"]
        b_i = jnp.concatenate([b_ih[:2 * H] + b_hh[:2 * H], b_ih[2 * H:]])
        upper.append([
            layer["w_ih"].T.astype(mm),                       # (H,3H) fused input w
            layer["w_hh"].T.astype(mm),                       # (H,3H) fused recurrent w
            b_i[None, :].astype(jnp.float32),                 # (1,3H) folded biases
            b_hh[2 * H:][None, :].astype(jnp.float32),        # (1,H) b_hn
        ])

    return {
        "wih0T": l0["w_ih"].T.astype(mm),                     # (C,3H)
        "gi_bias0": gi_bias0[None, :].astype(jnp.float32),    # (1,3H)
        "layer0": layer0,
        "layers": upper,
        "wlogT": params["logits_w"].T.astype(jnp.float32),    # (H,NC) head kept f32
        "blog": params["logits_b"][None, :].astype(jnp.float32),
    }


# ---------------------------------------------------------------------------
# Forward
# ---------------------------------------------------------------------------
@jax.jit
def gru_model_forward(x, prep):
    """x: (B, T, input_channels) batch_first. Returns (B, num_classes) f32 logits."""
    B, T, C = x.shape
    H, NC = prep["wlogT"].shape
    depth = 1 + len(prep["layers"])
    mm_dtype = prep["wih0T"].dtype

    # Hoisted layer-0 input projection: one big time-major matmul in XLA
    # (parallel / shardable), f32 accumulation, stored in the matmul dtype.
    x_tm = jnp.transpose(x, (1, 0, 2)).reshape(T * B, C).astype(mm_dtype)
    gi0 = jnp.dot(x_tm, prep["wih0T"], preferred_element_type=jnp.float32)
    gi0 = (gi0 + prep["gi_bias0"]).reshape(T, B, 3 * H).astype(mm_dtype)

    # Bounded unroll for long sequences; full unroll only when T is small.
    unroll = True if T <= 16 else 8

    kernel, n_inputs = _make_fused_kernel(depth, T, B, H, unroll)
    inputs = [gi0, *prep["layer0"]]
    for lp in prep["layers"]:
        inputs += lp
    inputs += [prep["wlogT"], prep["blog"]]
    assert len(inputs) == n_inputs

    scratch_shapes = []
    scratch_bytes = 0
    if depth > 1:
        scratch_shapes.append(pltpu.VMEM((T, B, H), mm_dtype))
        scratch_bytes = T * B * H * jnp.dtype(mm_dtype).itemsize

    # Size the scoped VMEM limit from the actual resident footprint (+headroom),
    # capped well below physical capacity (128 MiB v5e/v6e, 64 MiB v7x).
    in_bytes = sum(int(a.size) * a.dtype.itemsize for a in inputs)
    out_bytes = B * NC * 4
    vmem_limit = int(min(max(2 * (in_bytes + out_bytes + scratch_bytes) + (2 << 20),
                             16 << 20), 56 << 20))

    vmem = pltpu.MemorySpace.VMEM
    logits = pl.pallas_call(
        kernel,
        out_shape=jax.ShapeDtypeStruct((B, NC), jnp.float32),
        in_specs=[pl.BlockSpec(memory_space=vmem)] * n_inputs,
        out_specs=pl.BlockSpec(memory_space=vmem),
        scratch_shapes=scratch_shapes,
        compiler_params=pltpu.CompilerParams(vmem_limit_bytes=vmem_limit),
    )(*inputs)
    return logits


# ---------------------------------------------------------------------------
# Deterministic parameter init (PyTorch-style uniform(-1/sqrt(H), 1/sqrt(H)))
# ---------------------------------------------------------------------------
def init_params(key, input_channels, latent_dim, depth, num_classes):
    k = 1.0 / jnp.sqrt(latent_dim)
    layers = []
    for layer_idx in range(depth):
        in_dim = input_channels if layer_idx == 0 else latent_dim
        key, k1, k2, k3, k4 = jax.random.split(key, 5)
        layers.append({
            "w_ih": jax.random.uniform(k1, (3 * latent_dim, in_dim), jnp.float32, -k, k),
            "w_hh": jax.random.uniform(k2, (3 * latent_dim, latent_dim), jnp.float32, -k, k),
            "b_ih": jax.random.uniform(k3, (3 * latent_dim,), jnp.float32, -k, k),
            "b_hh": jax.random.uniform(k4, (3 * latent_dim,), jnp.float32, -k, k),
        })
    key, k5, k6 = jax.random.split(key, 3)
    return {
        "gru_layers": layers,
        "logits_w": jax.random.uniform(k5, (num_classes, latent_dim), jnp.float32, -k, k),
        "logits_b": jax.random.uniform(k6, (num_classes,), jnp.float32, -k, k),
    }


# ---------------------------------------------------------------------------
# Pure-JAX reference (for correctness check)
# ---------------------------------------------------------------------------
def gru_reference(x, params):
    B, T, _ = x.shape
    h_seq = x.astype(jnp.float32)
    for layer in params["gru_layers"]:
        H = layer["w_hh"].shape[1]
        h = jnp.zeros((B, H), jnp.float32)
        outs = []
        for t in range(T):
            xt = h_seq[:, t, :]
            gi = xt @ layer["w_ih"].T + layer["b_ih"]
            gh = h @ layer["w_hh"].T + layer["b_hh"]
            i_r, i_z, i_n = gi[:, :H], gi[:, H:2 * H], gi[:, 2 * H:]
            h_r, h_z, h_n = gh[:, :H], gh[:, H:2 * H], gh[:, 2 * H:]
            r = jax.nn.sigmoid(i_r + h_r)
            z = jax.nn.sigmoid(i_z + h_z)
            n = jnp.tanh(i_n + r * h_n)
            h = (1.0 - z) * n + z * h
            outs.append(h)
        h_seq = jnp.stack(outs, axis=1)
    final = h_seq[:, -1, :]
    return final @ params["logits_w"].T + params["logits_b"]


if __name__ == "__main__":
    B, T = 2, 8
    input_channels = 4
    latent_dim = 32
    depth = 2
    num_classes = 10

    key = jax.random.PRNGKey(0)
    key, pkey, xkey = jax.random.split(key, 3)
    params = init_params(pkey, input_channels, latent_dim, depth, num_classes)
    x = jax.random.normal(xkey, (B, T, input_channels), jnp.float32)

    ref = gru_reference(x, params)

    # f32 matmul path: strict correctness vs the pure-JAX reference.
    prep_f32 = prepare_params(params, compute_dtype=jnp.float32)
    logits_f32 = jax.block_until_ready(gru_model_forward(x, prep_f32))
    assert logits_f32.shape == (B, num_classes)
    assert jnp.allclose(logits_f32, ref, atol=2e-4, rtol=2e-4), \
        "Pallas GRU (f32) mismatch vs reference"

    # bf16 matmul path (the recommended perf configuration on v6e/v7x):
    # tolerance widened only for bf16 operand rounding; accumulation is still f32.
    prep_bf16 = prepare_params(params, compute_dtype=jnp.bfloat16)
    logits_bf16 = jax.block_until_ready(gru_model_forward(x, prep_bf16))
    assert logits_bf16.shape == (B, num_classes)
    assert jnp.allclose(logits_bf16, ref, atol=8e-2, rtol=8e-2), \
        "Pallas GRU (bf16) mismatch vs reference"

    print("KERNEL_OK")
</pallas_src>

<mosaic_0001>
module attributes {stable_mosaic.version = 11 : i64} {
  func.func @kernel(%arg0: memref<8x2x96xf32, #tpu.memory_space<vmem>>, %arg1: memref<32x96xf32, #tpu.memory_space<vmem>>, %arg2: memref<1x32xf32, #tpu.memory_space<vmem>>, %arg3: memref<32x96xf32, #tpu.memory_space<vmem>>, %arg4: memref<32x96xf32, #tpu.memory_space<vmem>>, %arg5: memref<1x96xf32, #tpu.memory_space<vmem>>, %arg6: memref<1x32xf32, #tpu.memory_space<vmem>>, %arg7: memref<32x10xf32, #tpu.memory_space<vmem>>, %arg8: memref<1x10xf32, #tpu.memory_space<vmem>>, %arg9: memref<2x10xf32, #tpu.memory_space<vmem>>, %arg10: memref<8x2x32xf32, #tpu.memory_space<vmem>>) attributes {dimension_semantics = [], scalar_prefetch = 0 : i64, scratch_operands = 1 : i64, tpu.core_type = #tpu.core_type<tc>} {
    %c0 = arith.constant 0 : index
    %c0_0 = arith.constant 0 : index
    %0 = vector.load %arg1[%c0, %c0_0] : memref<32x96xf32, #tpu.memory_space<vmem>>, vector<32x96xf32>
    %c0_1 = arith.constant 0 : index
    %c0_2 = arith.constant 0 : index
    %1 = vector.load %arg2[%c0_1, %c0_2] : memref<1x32xf32, #tpu.memory_space<vmem>>, vector<1x32xf32>
    %2 = vector.shape_cast %1 : vector<1x32xf32> to vector<1x32xf32>
    %3 = vector.broadcast %2 : vector<1x32xf32> to vector<2x32xf32>
    %cst = arith.constant 0.000000e+00 : f32
    %4 = vector.broadcast %cst : f32 to vector<2x32xf32>
    %c0_i32 = arith.constant 0 : i32
    %5 = arith.index_cast %c0_i32 : i32 to index
    %c0_3 = arith.constant 0 : index
    %c0_4 = arith.constant 0 : index
    %6 = vector.load %arg0[%5, %c0_3, %c0_4] : memref<8x2x96xf32, #tpu.memory_space<vmem>>, vector<1x2x96xf32>
    %7 = vector.shape_cast %6 : vector<1x2x96xf32> to vector<2x96xf32>
    %cst_5 = arith.constant dense<0.000000e+00> : vector<2x96xf32>
    %8 = tpu.matmul %4, %0, %cst_5 {dimension_numbers = #tpu.dot_dimension_numbers<[1], [0], [0], [1], [0, 0, 1, 1], [], []>} : vector<2x32xf32>, vector<32x96xf32>, vector<2x96xf32> -> vector<2x96xf32>
    %9 = vector.extract_strided_slice %7 {offsets = [0, 0], sizes = [2, 32], strides = [1, 1]} : vector<2x96xf32> to vector<2x32xf32>
    %10 = vector.extract_strided_slice %8 {offsets = [0, 0], sizes = [2, 32], strides = [1, 1]} : vector<2x96xf32> to vector<2x32xf32>
    %11 = arith.addf %9, %10 : vector<2x32xf32>
    %cst_6 = arith.constant 5.000000e-01 : f32
    %12 = vector.broadcast %cst_6 : f32 to vector<2x32xf32>
    %13 = arith.mulf %12, %11 : vector<2x32xf32>
    %14 = math.tanh %13 : vector<2x32xf32>
    %cst_7 = arith.constant 5.000000e-01 : f32
    %15 = vector.broadcast %cst_7 : f32 to vector<2x32xf32>
    %16 = arith.mulf %15, %14 : vector<2x32xf32>
    %cst_8 = arith.constant 5.000000e-01 : f32
    %17 = vector.broadcast %cst_8 : f32 to vector<2x32xf32>
    %18 = arith.addf %16, %17 : vector<2x32xf32>
    %19 = vector.extract_strided_slice %7 {offsets = [0, 32], sizes = [2, 32], strides = [1, 1]} : vector<2x96xf32> to vector<2x32xf32>
    %20 = vector.extract_strided_slice %8 {offsets = [0, 32], sizes = [2, 32], strides = [1, 1]} : vector<2x96xf32> to vector<2x32xf32>
    %21 = arith.addf %19, %20 : vector<2x32xf32>
    %cst_9 = arith.constant 5.000000e-01 : f32
    %22 = vector.broadcast %cst_9 : f32 to vector<2x32xf32>
    %23 = arith.mulf %22, %21 : vector<2x32xf32>
    %24 = math.tanh %23 : vector<2x32xf32>
    %cst_10 = arith.constant 5.000000e-01 : f32
    %25 = vector.broadcast %cst_10 : f32 to vector<2x32xf32>
    %26 = arith.mulf %25, %24 : vector<2x32xf32>
    %cst_11 = arith.constant 5.000000e-01 : f32
    %27 = vector.broadcast %cst_11 : f32 to vector<2x32xf32>
    %28 = arith.addf %26, %27 : vector<2x32xf32>
    %29 = vector.extract_strided_slice %7 {offsets = [0, 64], sizes = [2, 32], strides = [1, 1]} : vector<2x96xf32> to vector<2x32xf32>
    %30 = vector.extract_strided_slice %8 {offsets = [0, 64], sizes = [2, 32], strides = [1, 1]} : vector<2x96xf32> to vector<2x32xf32>
    %31 = arith.addf %30, %3 : vector<2x32xf32>
    %32 = arith.mulf %18, %31 : vector<2x32xf32>
    %33 = arith.addf %29, %32 : vector<2x32xf32>
    %34 = math.tanh %33 : vector<2x32xf32>
    %cst_12 = arith.constant 1.000000e+00 : f32
    %35 = vector.broadcast %cst_12 : f32 to vector<2x32xf32>
    %36 = arith.subf %35, %28 : vector<2x32xf32>
    %37 = arith.mulf %36, %34 : vector<2x32xf32>
    %38 = arith.mulf %28, %4 : vector<2x32xf32>
    %39 = arith.addf %37, %38 : vector<2x32xf32>
    %40 = arith.index_cast %c0_i32 : i32 to index
    %c0_13 = arith.constant 0 : index
    %c0_14 = arith.constant 0 : index
    %41 = vector.load %arg10[%40, %c0_13, %c0_14] : memref<8x2x32xf32, #tpu.memory_space<vmem>>, vector<1x2x32xf32>
    %42 = vector.shape_cast %41 : vector<1x2x32xf32> to vector<2x32xf32>
    %43 = vector.shape_cast %39 : vector<2x32xf32> to vector<1x2x32xf32>
    tpu.vector_store %arg10[%40, %c0_13, %c0_14], %43 {strides = array<i32>} : memref<8x2x32xf32, #tpu.memory_space<vmem>>, vector<1x2x32xf32>,
    %c1_i32 = arith.constant 1 : i32
    %44 = arith.index_cast %c1_i32 : i32 to index
    %c0_15 = arith.constant 0 : index
    %c0_16 = arith.constant 0 : index
    %45 = vector.load %arg0[%44, %c0_15, %c0_16] : memref<8x2x96xf32, #tpu.memory_space<vmem>>, vector<1x2x96xf32>
    %46 = vector.shape_cast %45 : vector<1x2x96xf32> to vector<2x96xf32>
    %cst_17 = arith.constant dense<0.000000e+00> : vector<2x96xf32>
    %47 = tpu.matmul %39, %0, %cst_17 {dimension_numbers = #tpu.dot_dimension_numbers<[1], [0], [0], [1], [0, 0, 1, 1], [], []>} : vector<2x32xf32>, vector<32x96xf32>, vector<2x96xf32> -> vector<2x96xf32>
    %48 = vector.extract_strided_slice %46 {offsets = [0, 0], sizes = [2, 32], strides = [1, 1]} : vector<2x96xf32> to vector<2x32xf32>
    %49 = vector.extract_strided_slice %47 {offsets = [0, 0], sizes = [2, 32], strides = [1, 1]} : vector<2x96xf32> to vector<2x32xf32>
    %50 = arith.addf %48, %49 : vector<2x32xf32>
    %cst_18 = arith.constant 5.000000e-01 : f32
    %51 = vector.broadcast %cst_18 : f32 to vector<2x32xf32>
    %52 = arith.mulf %51, %50 : vector<2x32xf32>
    %53 = math.tanh %52 : vector<2x32xf32>
    %cst_19 = arith.constant 5.000000e-01 : f32
    %54 = vector.broadcast %cst_19 : f32 to vector<2x32xf32>
    %55 = arith.mulf %54, %53 : vector<2x32xf32>
    %cst_20 = arith.constant 5.000000e-01 : f32
    %56 = vector.broadcast %cst_20 : f32 to vector<2x32xf32>
    %57 = arith.addf %55, %56 : vector<2x32xf32>
    %58 = vector.extract_strided_slice %46 {offsets = [0, 32], sizes = [2, 32], strides = [1, 1]} : vector<2x96xf32> to vector<2x32xf32>
    %59 = vector.extract_strided_slice %47 {offsets = [0, 32], sizes = [2, 32], strides = [1, 1]} : vector<2x96xf32> to vector<2x32xf32>
    %60 = arith.addf %58, %59 : vector<2x32xf32>
    %cst_21 = arith.constant 5.000000e-01 : f32
    %61 = vector.broadcast %cst_21 : f32 to vector<2x32xf32>
    %62 = arith.mulf %61, %60 : vector<2x32xf32>
    %63 = math.tanh %62 : vector<2x32xf32>
    %cst_22 = arith.constant 5.000000e-01 : f32
    %64 = vector.broadcast %cst_22 : f32 to vector<2x32xf32>
    %65 = arith.mulf %64, %63 : vector<2x32xf32>
    %cst_23 = arith.constant 5.000000e-01 : f32
    %66 = vector.broadcast %cst_23 : f32 to vector<2x32xf32>
    %67 = arith.addf %65, %66 : vector<2x32xf32>
    %68 = vector.extract_strided_slice %46 {offsets = [0, 64], sizes = [2, 32], strides = [1, 1]} : vector<2x96xf32> to vector<2x32xf32>
    %69 = vector.extract_strided_slice %47 {offsets = [0, 64], sizes = [2, 32], strides = [1, 1]} : vector<2x96xf32> to vector<2x32xf32>
    %70 = arith.addf %69, %3 : vector<2x32xf32>
    %71 = arith.mulf %57, %70 : vector<2x32xf32>
    %72 = arith.addf %68, %71 : vector<2x32xf32>
    %73 = math.tanh %72 : vector<2x32xf32>
    %cst_24 = arith.constant 1.000000e+00 : f32
    %74 = vector.broadcast %cst_24 : f32 to vector<2x32xf32>
    %75 = arith.subf %74, %67 : vector<2x32xf32>
    %76 = arith.mulf %75, %73 : vector<2x32xf32>
    %77 = arith.mulf %67, %39 : vector<2x32xf32>
    %78 = arith.addf %76, %77 : vector<2x32xf32>
    %79 = arith.index_cast %c1_i32 : i32 to index
    %c0_25 = arith.constant 0 : index
    %c0_26 = arith.constant 0 : index
    %80 = vector.load %arg10[%79, %c0_25, %c0_26] : memref<8x2x32xf32, #tpu.memory_space<vmem>>, vector<1x2x32xf32>
    %81 = vector.shape_cast %80 : vector<1x2x32xf32> to vector<2x32xf32>
    %82 = vector.shape_cast %78 : vector<2x32xf32> to vector<1x2x32xf32>
    tpu.vector_store %arg10[%79, %c0_25, %c0_26], %82 {strides = array<i32>} : memref<8x2x32xf32, #tpu.memory_space<vmem>>, vector<1x2x32xf32>,
    %c2_i32 = arith.constant 2 : i32
    %83 = arith.index_cast %c2_i32 : i32 to index
    %c0_27 = arith.constant 0 : index
    %c0_28 = arith.constant 0 : index
    %84 = vector.load %arg0[%83, %c0_27, %c0_28] : memref<8x2x96xf32, #tpu.memory_space<vmem>>, vector<1x2x96xf32>
    %85 = vector.shape_cast %84 : vector<1x2x96xf32> to vector<2x96xf32>
    %cst_29 = arith.constant dense<0.000000e+00> : vector<2x96xf32>
    %86 = tpu.matmul %78, %0, %cst_29 {dimension_numbers = #tpu.dot_dimension_numbers<[1], [0], [0], [1], [0, 0, 1, 1], [], []>} : vector<2x32xf32>, vector<32x96xf32>, vector<2x96xf32> -> vector<2x96xf32>
    %87 = vector.extract_strided_slice %85 {offsets = [0, 0], sizes = [2, 32], strides = [1, 1]} : vector<2x96xf32> to vector<2x32xf32>
    %88 = vector.extract_strided_slice %86 {offsets = [0, 0], sizes = [2, 32], strides = [1, 1]} : vector<2x96xf32> to vector<2x32xf32>
    %89 = arith.addf %87, %88 : vector<2x32xf32>
    %cst_30 = arith.constant 5.000000e-01 : f32
    %90 = vector.broadcast %cst_30 : f32 to vector<2x32xf32>
    %91 = arith.mulf %90, %89 : vector<2x32xf32>
    %92 = math.tanh %91 : vector<2x32xf32>
    %cst_31 = arith.constant 5.000000e-01 : f32
    %93 = vector.broadcast %cst_31 : f32 to vector<2x32xf32>
    %94 = arith.mulf %93, %92 : vector<2x32xf32>
    %cst_32 = arith.constant 5.000000e-01 : f32
    %95 = vector.broadcast %cst_32 : f32 to vector<2x32xf32>
    %96 = arith.addf %94, %95 : vector<2x32xf32>
    %97 = vector.extract_strided_slice %85 {offsets = [0, 32], sizes = [2, 32], strides = [1, 1]} : vector<2x96xf32> to vector<2x32xf32>
    %98 = vector.extract_strided_slice %86 {offsets = [0, 32], sizes = [2, 32], strides = [1, 1]} : vector<2x96xf32> to vector<2x32xf32>
    %99 = arith.addf %97, %98 : vector<2x32xf32>
    %cst_33 = arith.constant 5.000000e-01 : f32
    %100 = vector.broadcast %cst_33 : f32 to vector<2x32xf32>
    %101 = arith.mulf %100, %99 : vector<2x32xf32>
    %102 = math.tanh %101 : vector<2x32xf32>
    %cst_34 = arith.constant 5.000000e-01 : f32
    %103 = vector.broadcast %cst_34 : f32 to vector<2x32xf32>
    %104 = arith.mulf %103, %102 : vector<2x32xf32>
    %cst_35 = arith.constant 5.000000e-01 : f32
    %105 = vector.broadcast %cst_35 : f32 to vector<2x32xf32>
    %106 = arith.addf %104, %105 : vector<2x32xf32>
    %107 = vector.extract_strided_slice %85 {offsets = [0, 64], sizes = [2, 32], strides = [1, 1]} : vector<2x96xf32> to vector<2x32xf32>
    %108 = vector.extract_strided_slice %86 {offsets = [0, 64], sizes = [2, 32], strides = [1, 1]} : vector<2x96xf32> to vector<2x32xf32>
    %109 = arith.addf %108, %3 : vector<2x32xf32>
    %110 = arith.mulf %96, %109 : vector<2x32xf32>
    %111 = arith.addf %107, %110 : vector<2x32xf32>
    %112 = math.tanh %111 : vector<2x32xf32>
    %cst_36 = arith.constant 1.000000e+00 : f32
    %113 = vector.broadcast %cst_36 : f32 to vector<2x32xf32>
    %114 = arith.subf %113, %106 : vector<2x32xf32>
    %115 = arith.mulf %114, %112 : vector<2x32xf32>
    %116 = arith.mulf %106, %78 : vector<2x32xf32>
    %117 = arith.addf %115, %116 : vector<2x32xf32>
    %118 = arith.index_cast %c2_i32 : i32 to index
    %c0_37 = arith.constant 0 : index
    %c0_38 = arith.constant 0 : index
    %119 = vector.load %arg10[%118, %c0_37, %c0_38] : memref<8x2x32xf32, #tpu.memory_space<vmem>>, vector<1x2x32xf32>
    %120 = vector.shape_cast %119 : vector<1x2x32xf32> to vector<2x32xf32>
    %121 = vector.shape_cast %117 : vector<2x32xf32> to vector<1x2x32xf32>
    tpu.vector_store %arg10[%118, %c0_37, %c0_38], %121 {strides = array<i32>} : memref<8x2x32xf32, #tpu.memory_space<vmem>>, vector<1x2x32xf32>,
    %c3_i32 = arith.constant 3 : i32
    %122 = arith.index_cast %c3_i32 : i32 to index
    %c0_39 = arith.constant 0 : index
    %c0_40 = arith.constant 0 : index
    %123 = vector.load %arg0[%122, %c0_39, %c0_40] : memref<8x2x96xf32, #tpu.memory_space<vmem>>, vector<1x2x96xf32>
    %124 = vector.shape_cast %123 : vector<1x2x96xf32> to vector<2x96xf32>
    %cst_41 = arith.constant dense<0.000000e+00> : vector<2x96xf32>
    %125 = tpu.matmul %117, %0, %cst_41 {dimension_numbers = #tpu.dot_dimension_numbers<[1], [0], [0], [1], [0, 0, 1, 1], [], []>} : vector<2x32xf32>, vector<32x96xf32>, vector<2x96xf32> -> vector<2x96xf32>
    %126 = vector.extract_strided_slice %124 {offsets = [0, 0], sizes = [2, 32], strides = [1, 1]} : vector<2x96xf32> to vector<2x32xf32>
    %127 = vector.extract_strided_slice %125 {offsets = [0, 0], sizes = [2, 32], strides = [1, 1]} : vector<2x96xf32> to vector<2x32xf32>
    %128 = arith.addf %126, %127 : vector<2x32xf32>
    %cst_42 = arith.constant 5.000000e-01 : f32
    %129 = vector.broadcast %cst_42 : f32 to vector<2x32xf32>
    %130 = arith.mulf %129, %128 : vector<2x32xf32>
    %131 = math.tanh %130 : vector<2x32xf32>
    %cst_43 = arith.constant 5.000000e-01 : f32
    %132 = vector.broadcast %cst_43 : f32 to vector<2x32xf32>
    %133 = arith.mulf %132, %131 : vector<2x32xf32>
    %cst_44 = arith.constant 5.000000e-01 : f32
    %134 = vector.broadcast %cst_44 : f32 to vector<2x32xf32>
    %135 = arith.addf %133, %134 : vector<2x32xf32>
    %136 = vector.extract_strided_slice %124 {offsets = [0, 32], sizes = [2, 32], strides = [1, 1]} : vector<2x96xf32> to vector<2x32xf32>
    %137 = vector.extract_strided_slice %125 {offsets = [0, 32], sizes = [2, 32], strides = [1, 1]} : vector<2x96xf32> to vector<2x32xf32>
    %138 = arith.addf %136, %137 : vector<2x32xf32>
    %cst_45 = arith.constant 5.000000e-01 : f32
    %139 = vector.broadcast %cst_45 : f32 to vector<2x32xf32>
    %140 = arith.mulf %139, %138 : vector<2x32xf32>
    %141 = math.tanh %140 : vector<2x32xf32>
    %cst_46 = arith.constant 5.000000e-01 : f32
    %142 = vector.broadcast %cst_46 : f32 to vector<2x32xf32>
    %143 = arith.mulf %142, %141 : vector<2x32xf32>
    %cst_47 = arith.constant 5.000000e-01 : f32
    %144 = vector.broadcast %cst_47 : f32 to vector<2x32xf32>
    %145 = arith.addf %143, %144 : vector<2x32xf32>
    %146 = vector.extract_strided_slice %124 {offsets = [0, 64], sizes = [2, 32], strides = [1, 1]} : vector<2x96xf32> to vector<2x32xf32>
    %147 = vector.extract_strided_slice %125 {offsets = [0, 64], sizes = [2, 32], strides = [1, 1]} : vector<2x96xf32> to vector<2x32xf32>
    %148 = arith.addf %147, %3 : vector<2x32xf32>
    %149 = arith.mulf %135, %148 : vector<2x32xf32>
    %150 = arith.addf %146, %149 : vector<2x32xf32>
    %151 = math.tanh %150 : vector<2x32xf32>
    %cst_48 = arith.constant 1.000000e+00 : f32
    %152 = vector.broadcast %cst_48 : f32 to vector<2x32xf32>
    %153 = arith.subf %152, %145 : vector<2x32xf32>
    %154 = arith.mulf %153, %151 : vector<2x32xf32>
    %155 = arith.mulf %145, %117 : vector<2x32xf32>
    %156 = arith.addf %154, %155 : vector<2x32xf32>
    %157 = arith.index_cast %c3_i32 : i32 to index
    %c0_49 = arith.constant 0 : index
    %c0_50 = arith.constant 0 : index
    %158 = vector.load %arg10[%157, %c0_49, %c0_50] : memref<8x2x32xf32, #tpu.memory_space<vmem>>, vector<1x2x32xf32>
    %159 = vector.shape_cast %158 : vector<1x2x32xf32> to vector<2x32xf32>
    %160 = vector.shape_cast %156 : vector<2x32xf32> to vector<1x2x32xf32>
    tpu.vector_store %arg10[%157, %c0_49, %c0_50], %160 {strides = array<i32>} : memref<8x2x32xf32, #tpu.memory_space<vmem>>, vector<1x2x32xf32>,
    %c4_i32 = arith.constant 4 : i32
    %161 = arith.index_cast %c4_i32 : i32 to index
    %c0_51 = arith.constant 0 : index
    %c0_52 = arith.constant 0 : index
    %162 = vector.load %arg0[%161, %c0_51, %c0_52] : memref<8x2x96xf32, #tpu.memory_space<vmem>>, vector<1x2x96xf32>
    %163 = vector.shape_cast %162 : vector<1x2x96xf32> to vector<2x96xf32>
    %cst_53 = arith.constant dense<0.000000e+00> : vector<2x96xf32>
    %164 = tpu.matmul %156, %0, %cst_53 {dimension_numbers = #tpu.dot_dimension_numbers<[1], [0], [0], [1], [0, 0, 1, 1], [], []>} : vector<2x32xf32>, vector<32x96xf32>, vector<2x96xf32> -> vector<2x96xf32>
    %165 = vector.extract_strided_slice %163 {offsets = [0, 0], sizes = [2, 32], strides = [1, 1]} : vector<2x96xf32> to vector<2x32xf32>
    %166 = vector.extract_strided_slice %164 {offsets = [0, 0], sizes = [2, 32], strides = [1, 1]} : vector<2x96xf32> to vector<2x32xf32>
    %167 = arith.addf %165, %166 : vector<2x32xf32>
    %cst_54 = arith.constant 5.000000e-01 : f32
    %168 = vector.broadcast %cst_54 : f32 to vector<2x32xf32>
    %169 = arith.mulf %168, %167 : vector<2x32xf32>
    %170 = math.tanh %169 : vector<2x32xf32>
    %cst_55 = arith.constant 5.000000e-01 : f32
    %171 = vector.broadcast %cst_55 : f32 to vector<2x32xf32>
    %172 = arith.mulf %171, %170 : vector<2x32xf32>
    %cst_56 = arith.constant 5.000000e-01 : f32
    %173 = vector.broadcast %cst_56 : f32 to vector<2x32xf32>
    %174 = arith.addf %172, %173 : vector<2x32xf32>
    %175 = vector.extract_strided_slice %163 {offsets = [0, 32], sizes = [2, 32], strides = [1, 1]} : vector<2x96xf32> to vector<2x32xf32>
    %176 = vector.extract_strided_slice %164 {offsets = [0, 32], sizes = [2, 32], strides = [1, 1]} : vector<2x96xf32> to vector<2x32xf32>
    %177 = arith.addf %175, %176 : vector<2x32xf32>
    %cst_57 = arith.constant 5.000000e-01 : f32
    %178 = vector.broadcast %cst_57 : f32 to vector<2x32xf32>
    %179 = arith.mulf %178, %177 : vector<2x32xf32>
    %180 = math.tanh %179 : vector<2x32xf32>
    %cst_58 = arith.constant 5.000000e-01 : f32
    %181 = vector.broadcast %cst_58 : f32 to vector<2x32xf32>
    %182 = arith.mulf %181, %180 : vector<2x32xf32>
    %cst_59 = arith.constant 5.000000e-01 : f32
    %183 = vector.broadcast %cst_59 : f32 to vector<2x32xf32>
    %184 = arith.addf %182, %183 : vector<2x32xf32>
    %185 = vector.extract_strided_slice %163 {offsets = [0, 64], sizes = [2, 32], strides = [1, 1]} : vector<2x96xf32> to vector<2x32xf32>
    %186 = vector.extract_strided_slice %164 {offsets = [0, 64], sizes = [2, 32], strides = [1, 1]} : vector<2x96xf32> to vector<2x32xf32>
    %187 = arith.addf %186, %3 : vector<2x32xf32>
    %188 = arith.mulf %174, %187 : vector<2x32xf32>
    %189 = arith.addf %185, %188 : vector<2x32xf32>
    %190 = math.tanh %189 : vector<2x32xf32>
    %cst_60 = arith.constant 1.000000e+00 : f32
    %191 = vector.broadcast %cst_60 : f32 to vector<2x32xf32>
    %192 = arith.subf %191, %184 : vector<2x32xf32>
    %193 = arith.mulf %192, %190 : vector<2x32xf32>
    %194 = arith.mulf %184, %156 : vector<2x32xf32>
    %195 = arith.addf %193, %194 : vector<2x32xf32>
    %196 = arith.index_cast %c4_i32 : i32 to index
    %c0_61 = arith.constant 0 : index
    %c0_62 = arith.constant 0 : index
    %197 = vector.load %arg10[%196, %c0_61, %c0_62] : memref<8x2x32xf32, #tpu.memory_space<vmem>>, vector<1x2x32xf32>
    %198 = vector.shape_cast %197 : vector<1x2x32xf32> to vector<2x32xf32>
    %199 = vector.shape_cast %195 : vector<2x32xf32> to vector<1x2x32xf32>
    tpu.vector_store %arg10[%196, %c0_61, %c0_62], %199 {strides = array<i32>} : memref<8x2x32xf32, #tpu.memory_space<vmem>>, vector<1x2x32xf32>,
    %c5_i32 = arith.constant 5 : i32
    %200 = arith.index_cast %c5_i32 : i32 to index
    %c0_63 = arith.constant 0 : index
    %c0_64 = arith.constant 0 : index
    %201 = vector.load %arg0[%200, %c0_63, %c0_64] : memref<8x2x96xf32, #tpu.memory_space<vmem>>, vector<1x2x96xf32>
    %202 = vector.shape_cast %201 : vector<1x2x96xf32> to vector<2x96xf32>
    %cst_65 = arith.constant dense<0.000000e+00> : vector<2x96xf32>
    %203 = tpu.matmul %195, %0, %cst_65 {dimension_numbers = #tpu.dot_dimension_numbers<[1], [0], [0], [1], [0, 0, 1, 1], [], []>} : vector<2x32xf32>, vector<32x96xf32>, vector<2x96xf32> -> vector<2x96xf32>
    %204 = vector.extract_strided_slice %202 {offsets = [0, 0], sizes = [2, 32], strides = [1, 1]} : vector<2x96xf32> to vector<2x32xf32>
    %205 = vector.extract_strided_slice %203 {offsets = [0, 0], sizes = [2, 32], strides = [1, 1]} : vector<2x96xf32> to vector<2x32xf32>
    %206 = arith.addf %204, %205 : vector<2x32xf32>
    %cst_66 = arith.constant 5.000000e-01 : f32
    %207 = vector.broadcast %cst_66 : f32 to vector<2x32xf32>
    %208 = arith.mulf %207, %206 : vector<2x32xf32>
    %209 = math.tanh %208 : vector<2x32xf32>
    %cst_67 = arith.constant 5.000000e-01 : f32
    %210 = vector.broadcast %cst_67 : f32 to vector<2x32xf32>
    %211 = arith.mulf %210, %209 : vector<2x32xf32>
    %cst_68 = arith.constant 5.000000e-01 : f32
    %212 = vector.broadcast %cst_68 : f32 to vector<2x32xf32>
    %213 = arith.addf %211, %212 : vector<2x32xf32>
    %214 = vector.extract_strided_slice %202 {offsets = [0, 32], sizes = [2, 32], strides = [1, 1]} : vector<2x96xf32> to vector<2x32xf32>
    %215 = vector.extract_strided_slice %203 {offsets = [0, 32], sizes = [2, 32], strides = [1, 1]} : vector<2x96xf32> to vector<2x32xf32>
    %216 = arith.addf %214, %215 : vector<2x32xf32>
    %cst_69 = arith.constant 5.000000e-01 : f32
    %217 = vector.broadcast %cst_69 : f32 to vector<2x32xf32>
    %218 = arith.mulf %217, %216 : vector<2x32xf32>
    %219 = math.tanh %218 : vector<2x32xf32>
    %cst_70 = arith.constant 5.000000e-01 : f32
    %220 = vector.broadcast %cst_70 : f32 to vector<2x32xf32>
    %221 = arith.mulf %220, %219 : vector<2x32xf32>
    %cst_71 = arith.constant 5.000000e-01 : f32
    %222 = vector.broadcast %cst_71 : f32 to vector<2x32xf32>
    %223 = arith.addf %221, %222 : vector<2x32xf32>
    %224 = vector.extract_strided_slice %202 {offsets = [0, 64], sizes = [2, 32], strides = [1, 1]} : vector<2x96xf32> to vector<2x32xf32>
    %225 = vector.extract_strided_slice %203 {offsets = [0, 64], sizes = [2, 32], strides = [1, 1]} : vector<2x96xf32> to vector<2x32xf32>
    %226 = arith.addf %225, %3 : vector<2x32xf32>
    %227 = arith.mulf %213, %226 : vector<2x32xf32>
    %228 = arith.addf %224, %227 : vector<2x32xf32>
    %229 = math.tanh %228 : vector<2x32xf32>
    %cst_72 = arith.constant 1.000000e+00 : f32
    %230 = vector.broadcast %cst_72 : f32 to vector<2x32xf32>
    %231 = arith.subf %230, %223 : vector<2x32xf32>
    %232 = arith.mulf %231, %229 : vector<2x32xf32>
    %233 = arith.mulf %223, %195 : vector<2x32xf32>
    %234 = arith.addf %232, %233 : vector<2x32xf32>
    %235 = arith.index_cast %c5_i32 : i32 to index
    %c0_73 = arith.constant 0 : index
    %c0_74 = arith.constant 0 : index
    %236 = vector.load %arg10[%235, %c0_73, %c0_74] : memref<8x2x32xf32, #tpu.memory_space<vmem>>, vector<1x2x32xf32>
    %237 = vector.shape_cast %236 : vector<1x2x32xf32> to vector<2x32xf32>
    %238 = vector.shape_cast %234 : vector<2x32xf32> to vector<1x2x32xf32>
    tpu.vector_store %arg10[%235, %c0_73, %c0_74], %238 {strides = array<i32>} : memref<8x2x32xf32, #tpu.memory_space<vmem>>, vector<1x2x32xf32>,
    %c6_i32 = arith.constant 6 : i32
    %239 = arith.index_cast %c6_i32 : i32 to index
    %c0_75 = arith.constant 0 : index
    %c0_76 = arith.constant 0 : index
    %240 = vector.load %arg0[%239, %c0_75, %c0_76] : memref<8x2x96xf32, #tpu.memory_space<vmem>>, vector<1x2x96xf32>
    %241 = vector.shape_cast %240 : vector<1x2x96xf32> to vector<2x96xf32>
    %cst_77 = arith.constant dense<0.000000e+00> : vector<2x96xf32>
    %242 = tpu.matmul %234, %0, %cst_77 {dimension_numbers = #tpu.dot_dimension_numbers<[1], [0], [0], [1], [0, 0, 1, 1], [], []>} : vector<2x32xf32>, vector<32x96xf32>, vector<2x96xf32> -> vector<2x96xf32>
    %243 = vector.extract_strided_slice %241 {offsets = [0, 0], sizes = [2, 32], strides = [1, 1]} : vector<2x96xf32> to vector<2x32xf32>
    %244 = vector.extract_strided_slice %242 {offsets = [0, 0], sizes = [2, 32], strides = [1, 1]} : vector<2x96xf32> to vector<2x32xf32>
    %245 = arith.addf %243, %244 : vector<2x32xf32>
    %cst_78 = arith.constant 5.000000e-01 : f32
    %246 = vector.broadcast %cst_78 : f32 to vector<2x32xf32>
    %247 = arith.mulf %246, %245 : vector<2x32xf32>
    %248 = math.tanh %247 : vector<2x32xf32>
    %cst_79 = arith.constant 5.000000e-01 : f32
    %249 = vector.broadcast %cst_79 : f32 to vector<2x32xf32>
    %250 = arith.mulf %249, %248 : vector<2x32xf32>
    %cst_80 = arith.constant 5.000000e-01 : f32
    %251 = vector.broadcast %cst_80 : f32 to vector<2x32xf32>
    %252 = arith.addf %250, %251 : vector<2x32xf32>
    %253 = vector.extract_strided_slice %241 {offsets = [0, 32], sizes = [2, 32], strides = [1, 1]} : vector<2x96xf32> to vector<2x32xf32>
    %254 = vector.extract_strided_slice %242 {offsets = [0, 32], sizes = [2, 32], strides = [1, 1]} : vector<2x96xf32> to vector<2x32xf32>
    %255 = arith.addf %253, %254 : vector<2x32xf32>
    %cst_81 = arith.constant 5.000000e-01 : f32
    %256 = vector.broadcast %cst_81 : f32 to vector<2x32xf32>
    %257 = arith.mulf %256, %255 : vector<2x32xf32>
    %258 = math.tanh %257 : vector<2x32xf32>
    %cst_82 = arith.constant 5.000000e-01 : f32
    %259 = vector.broadcast %cst_82 : f32 to vector<2x32xf32>
    %260 = arith.mulf %259, %258 : vector<2x32xf32>
    %cst_83 = arith.constant 5.000000e-01 : f32
    %261 = vector.broadcast %cst_83 : f32 to vector<2x32xf32>
    %262 = arith.addf %260, %261 : vector<2x32xf32>
    %263 = vector.extract_strided_slice %241 {offsets = [0, 64], sizes = [2, 32], strides = [1, 1]} : vector<2x96xf32> to vector<2x32xf32>
    %264 = vector.extract_strided_slice %242 {offsets = [0, 64], sizes = [2, 32], strides = [1, 1]} : vector<2x96xf32> to vector<2x32xf32>
    %265 = arith.addf %264, %3 : vector<2x32xf32>
    %266 = arith.mulf %252, %265 : vector<2x32xf32>
    %267 = arith.addf %263, %266 : vector<2x32xf32>
    %268 = math.tanh %267 : vector<2x32xf32>
    %cst_84 = arith.constant 1.000000e+00 : f32
    %269 = vector.broadcast %cst_84 : f32 to vector<2x32xf32>
    %270 = arith.subf %269, %262 : vector<2x32xf32>
    %271 = arith.mulf %270, %268 : vector<2x32xf32>
    %272 = arith.mulf %262, %234 : vector<2x32xf32>
    %273 = arith.addf %271, %272 : vector<2x32xf32>
    %274 = arith.index_cast %c6_i32 : i32 to index
    %c0_85 = arith.constant 0 : index
    %c0_86 = arith.constant 0 : index
    %275 = vector.load %arg10[%274, %c0_85, %c0_86] : memref<8x2x32xf32, #tpu.memory_space<vmem>>, vector<1x2x32xf32>
    %276 = vector.shape_cast %275 : vector<1x2x32xf32> to vector<2x32xf32>
    %277 = vector.shape_cast %273 : vector<2x32xf32> to vector<1x2x32xf32>
    tpu.vector_store %arg10[%274, %c0_85, %c0_86], %277 {strides = array<i32>} : memref<8x2x32xf32, #tpu.memory_space<vmem>>, vector<1x2x32xf32>,
    %c7_i32 = arith.constant 7 : i32
    %278 = arith.index_cast %c7_i32 : i32 to index
    %c0_87 = arith.constant 0 : index
    %c0_88 = arith.constant 0 : index
    %279 = vector.load %arg0[%278, %c0_87, %c0_88] : memref<8x2x96xf32, #tpu.memory_space<vmem>>, vector<1x2x96xf32>
    %280 = vector.shape_cast %279 : vector<1x2x96xf32> to vector<2x96xf32>
    %cst_89 = arith.constant dense<0.000000e+00> : vector<2x96xf32>
    %281 = tpu.matmul %273, %0, %cst_89 {dimension_numbers = #tpu.dot_dimension_numbers<[1], [0], [0], [1], [0, 0, 1, 1], [], []>} : vector<2x32xf32>, vector<32x96xf32>, vector<2x96xf32> -> vector<2x96xf32>
    %282 = vector.extract_strided_slice %280 {offsets = [0, 0], sizes = [2, 32], strides = [1, 1]} : vector<2x96xf32> to vector<2x32xf32>
    %283 = vector.extract_strided_slice %281 {offsets = [0, 0], sizes = [2, 32], strides = [1, 1]} : vector<2x96xf32> to vector<2x32xf32>
    %284 = arith.addf %282, %283 : vector<2x32xf32>
    %cst_90 = arith.constant 5.000000e-01 : f32
    %285 = vector.broadcast %cst_90 : f32 to vector<2x32xf32>
    %286 = arith.mulf %285, %284 : vector<2x32xf32>
    %287 = math.tanh %286 : vector<2x32xf32>
    %cst_91 = arith.constant 5.000000e-01 : f32
    %288 = vector.broadcast %cst_91 : f32 to vector<2x32xf32>
    %289 = arith.mulf %288, %287 : vector<2x32xf32>
    %cst_92 = arith.constant 5.000000e-01 : f32
    %290 = vector.broadcast %cst_92 : f32 to vector<2x32xf32>
    %291 = arith.addf %289, %290 : vector<2x32xf32>
    %292 = vector.extract_strided_slice %280 {offsets = [0, 32], sizes = [2, 32], strides = [1, 1]} : vector<2x96xf32> to vector<2x32xf32>
    %293 = vector.extract_strided_slice %281 {offsets = [0, 32], sizes = [2, 32], strides = [1, 1]} : vector<2x96xf32> to vector<2x32xf32>
    %294 = arith.addf %292, %293 : vector<2x32xf32>
    %cst_93 = arith.constant 5.000000e-01 : f32
    %295 = vector.broadcast %cst_93 : f32 to vector<2x32xf32>
    %296 = arith.mulf %295, %294 : vector<2x32xf32>
    %297 = math.tanh %296 : vector<2x32xf32>
    %cst_94 = arith.constant 5.000000e-01 : f32
    %298 = vector.broadcast %cst_94 : f32 to vector<2x32xf32>
    %299 = arith.mulf %298, %297 : vector<2x32xf32>
    %cst_95 = arith.constant 5.000000e-01 : f32
    %300 = vector.broadcast %cst_95 : f32 to vector<2x32xf32>
    %301 = arith.addf %299, %300 : vector<2x32xf32>
    %302 = vector.extract_strided_slice %280 {offsets = [0, 64], sizes = [2, 32], strides = [1, 1]} : vector<2x96xf32> to vector<2x32xf32>
    %303 = vector.extract_strided_slice %281 {offsets = [0, 64], sizes = [2, 32], strides = [1, 1]} : vector<2x96xf32> to vector<2x32xf32>
    %304 = arith.addf %303, %3 : vector<2x32xf32>
    %305 = arith.mulf %291, %304 : vector<2x32xf32>
    %306 = arith.addf %302, %305 : vector<2x32xf32>
    %307 = math.tanh %306 : vector<2x32xf32>
    %cst_96 = arith.constant 1.000000e+00 : f32
    %308 = vector.broadcast %cst_96 : f32 to vector<2x32xf32>
    %309 = arith.subf %308, %301 : vector<2x32xf32>
    %310 = arith.mulf %309, %307 : vector<2x32xf32>
    %311 = arith.mulf %301, %273 : vector<2x32xf32>
    %312 = arith.addf %310, %311 : vector<2x32xf32>
    %313 = arith.index_cast %c7_i32 : i32 to index
    %c0_97 = arith.constant 0 : index
    %c0_98 = arith.constant 0 : index
    %314 = vector.load %arg10[%313, %c0_97, %c0_98] : memref<8x2x32xf32, #tpu.memory_space<vmem>>, vector<1x2x32xf32>
    %315 = vector.shape_cast %314 : vector<1x2x32xf32> to vector<2x32xf32>
    %316 = vector.shape_cast %312 : vector<2x32xf32> to vector<1x2x32xf32>
    tpu.vector_store %arg10[%313, %c0_97, %c0_98], %316 {strides = array<i32>} : memref<8x2x32xf32, #tpu.memory_space<vmem>>, vector<1x2x32xf32>,
    %c8_i32 = arith.constant 8 : i32
    %c0_99 = arith.constant 0 : index
    %c0_100 = arith.constant 0 : index
    %317 = vector.load %arg3[%c0_99, %c0_100] : memref<32x96xf32, #tpu.memory_space<vmem>>, vector<32x96xf32>
    %c0_101 = arith.constant 0 : index
    %c0_102 = arith.constant 0 : index
    %318 = vector.load %arg4[%c0_101, %c0_102] : memref<32x96xf32, #tpu.memory_space<vmem>>, vector<32x96xf32>
    %c0_103 = arith.constant 0 : index
    %c0_104 = arith.constant 0 : index
    %319 = vector.load %arg5[%c0_103, %c0_104] : memref<1x96xf32, #tpu.memory_space<vmem>>, vector<1x96xf32>
    %320 = vector.shape_cast %319 : vector<1x96xf32> to vector<1x96xf32>
    %321 = vector.broadcast %320 : vector<1x96xf32> to vector<2x96xf32>
    %c0_105 = arith.constant 0 : index
    %c0_106 = arith.constant 0 : index
    %322 = vector.load %arg6[%c0_105, %c0_106] : memref<1x32xf32, #tpu.memory_space<vmem>>, vector<1x32xf32>
    %323 = vector.shape_cast %322 : vector<1x32xf32> to vector<1x32xf32>
    %324 = vector.broadcast %323 : vector<1x32xf32> to vector<2x32xf32>
    %cst_107 = arith.constant 0.000000e+00 : f32
    %325 = vector.broadcast %cst_107 : f32 to vector<2x32xf32>
    %c0_i32_108 = arith.constant 0 : i32
    %326 = arith.index_cast %c0_i32_108 : i32 to index
    %c0_109 = arith.constant 0 : index
    %c0_110 = arith.constant 0 : index
    %327 = vector.load %arg10[%326, %c0_109, %c0_110] : memref<8x2x32xf32, #tpu.memory_space<vmem>>, vector<1x2x32xf32>
    %328 = vector.shape_cast %327 : vector<1x2x32xf32> to vector<2x32xf32>
    %cst_111 = arith.constant dense<0.000000e+00> : vector<2x96xf32>
    %329 = tpu.matmul %328, %317, %cst_111 {dimension_numbers = #tpu.dot_dimension_numbers<[1], [0], [0], [1], [0, 0, 1, 1], [], []>} : vector<2x32xf32>, vector<32x96xf32>, vector<2x96xf32> -> vector<2x96xf32>
    %330 = arith.addf %329, %321 : vector<2x96xf32>
    %cst_112 = arith.constant dense<0.000000e+00> : vector<2x96xf32>
    %331 = tpu.matmul %325, %318, %cst_112 {dimension_numbers = #tpu.dot_dimension_numbers<[1], [0], [0], [1], [0, 0, 1, 1], [], []>} : vector<2x32xf32>, vector<32x96xf32>, vector<2x96xf32> -> vector<2x96xf32>
    %332 = vector.extract_strided_slice %330 {offsets = [0, 0], sizes = [2, 32], strides = [1, 1]} : vector<2x96xf32> to vector<2x32xf32>
    %333 = vector.extract_strided_slice %331 {offsets = [0, 0], sizes = [2, 32], strides = [1, 1]} : vector<2x96xf32> to vector<2x32xf32>
    %334 = arith.addf %332, %333 : vector<2x32xf32>
    %cst_113 = arith.constant 5.000000e-01 : f32
    %335 = vector.broadcast %cst_113 : f32 to vector<2x32xf32>
    %336 = arith.mulf %335, %334 : vector<2x32xf32>
    %337 = math.tanh %336 : vector<2x32xf32>
    %cst_114 = arith.constant 5.000000e-01 : f32
    %338 = vector.broadcast %cst_114 : f32 to vector<2x32xf32>
    %339 = arith.mulf %338, %337 : vector<2x32xf32>
    %cst_115 = arith.constant 5.000000e-01 : f32
    %340 = vector.broadcast %cst_115 : f32 to vector<2x32xf32>
    %341 = arith.addf %339, %340 : vector<2x32xf32>
    %342 = vector.extract_strided_slice %330 {offsets = [0, 32], sizes = [2, 32], strides = [1, 1]} : vector<2x96xf32> to vector<2x32xf32>
    %343 = vector.extract_strided_slice %331 {offsets = [0, 32], sizes = [2, 32], strides = [1, 1]} : vector<2x96xf32> to vector<2x32xf32>
    %344 = arith.addf %342, %343 : vector<2x32xf32>
    %cst_116 = arith.constant 5.000000e-01 : f32
    %345 = vector.broadcast %cst_116 : f32 to vector<2x32xf32>
    %346 = arith.mulf %345, %344 : vector<2x32xf32>
    %347 = math.tanh %346 : vector<2x32xf32>
    %cst_117 = arith.constant 5.000000e-01 : f32
    %348 = vector.broadcast %cst_117 : f32 to vector<2x32xf32>
    %349 = arith.mulf %348, %347 : vector<2x32xf32>
    %cst_118 = arith.constant 5.000000e-01 : f32
    %350 = vector.broadcast %cst_118 : f32 to vector<2x32xf32>
    %351 = arith.addf %349, %350 : vector<2x32xf32>
    %352 = vector.extract_strided_slice %330 {offsets = [0, 64], sizes = [2, 32], strides = [1, 1]} : vector<2x96xf32> to vector<2x32xf32>
    %353 = vector.extract_strided_slice %331 {offsets = [0, 64], sizes = [2, 32], strides = [1, 1]} : vector<2x96xf32> to vector<2x32xf32>
    %354 = arith.addf %353, %324 : vector<2x32xf32>
    %355 = arith.mulf %341, %354 : vector<2x32xf32>
    %356 = arith.addf %352, %355 : vector<2x32xf32>
    %357 = math.tanh %356 : vector<2x32xf32>
    %cst_119 = arith.constant 1.000000e+00 : f32
    %358 = vector.broadcast %cst_119 : f32 to vector<2x32xf32>
    %359 = arith.subf %358, %351 : vector<2x32xf32>
    %360 = arith.mulf %359, %357 : vector<2x32xf32>
    %361 = arith.mulf %351, %325 : vector<2x32xf32>
    %362 = arith.addf %360, %361 : vector<2x32xf32>
    %c1_i32_120 = arith.constant 1 : i32
    %363 = arith.index_cast %c1_i32_120 : i32 to index
    %c0_121 = arith.constant 0 : index
    %c0_122 = arith.constant 0 : index
    %364 = vector.load %arg10[%363, %c0_121, %c0_122] : memref<8x2x32xf32, #tpu.memory_space<vmem>>, vector<1x2x32xf32>
    %365 = vector.shape_cast %364 : vector<1x2x32xf32> to vector<2x32xf32>
    %cst_123 = arith.constant dense<0.000000e+00> : vector<2x96xf32>
    %366 = tpu.matmul %365, %317, %cst_123 {dimension_numbers = #tpu.dot_dimension_numbers<[1], [0], [0], [1], [0, 0, 1, 1], [], []>} : vector<2x32xf32>, vector<32x96xf32>, vector<2x96xf32> -> vector<2x96xf32>
    %367 = arith.addf %366, %321 : vector<2x96xf32>
    %cst_124 = arith.constant dense<0.000000e+00> : vector<2x96xf32>
    %368 = tpu.matmul %362, %318, %cst_124 {dimension_numbers = #tpu.dot_dimension_numbers<[1], [0], [0], [1], [0, 0, 1, 1], [], []>} : vector<2x32xf32>, vector<32x96xf32>, vector<2x96xf32> -> vector<2x96xf32>
    %369 = vector.extract_strided_slice %367 {offsets = [0, 0], sizes = [2, 32], strides = [1, 1]} : vector<2x96xf32> to vector<2x32xf32>
    %370 = vector.extract_strided_slice %368 {offsets = [0, 0], sizes = [2, 32], strides = [1, 1]} : vector<2x96xf32> to vector<2x32xf32>
    %371 = arith.addf %369, %370 : vector<2x32xf32>
    %cst_125 = arith.constant 5.000000e-01 : f32
    %372 = vector.broadcast %cst_125 : f32 to vector<2x32xf32>
    %373 = arith.mulf %372, %371 : vector<2x32xf32>
    %374 = math.tanh %373 : vector<2x32xf32>
    %cst_126 = arith.constant 5.000000e-01 : f32
    %375 = vector.broadcast %cst_126 : f32 to vector<2x32xf32>
    %376 = arith.mulf %375, %374 : vector<2x32xf32>
    %cst_127 = arith.constant 5.000000e-01 : f32
    %377 = vector.broadcast %cst_127 : f32 to vector<2x32xf32>
    %378 = arith.addf %376, %377 : vector<2x32xf32>
    %379 = vector.extract_strided_slice %367 {offsets = [0, 32], sizes = [2, 32], strides = [1, 1]} : vector<2x96xf32> to vector<2x32xf32>
    %380 = vector.extract_strided_slice %368 {offsets = [0, 32], sizes = [2, 32], strides = [1, 1]} : vector<2x96xf32> to vector<2x32xf32>
    %381 = arith.addf %379, %380 : vector<2x32xf32>
    %cst_128 = arith.constant 5.000000e-01 : f32
    %382 = vector.broadcast %cst_128 : f32 to vector<2x32xf32>
    %383 = arith.mulf %382, %381 : vector<2x32xf32>
    %384 = math.tanh %383 : vector<2x32xf32>
    %cst_129 = arith.constant 5.000000e-01 : f32
    %385 = vector.broadcast %cst_129 : f32 to vector<2x32xf32>
    %386 = arith.mulf %385, %384 : vector<2x32xf32>
    %cst_130 = arith.constant 5.000000e-01 : f32
    %387 = vector.broadcast %cst_130 : f32 to vector<2x32xf32>
    %388 = arith.addf %386, %387 : vector<2x32xf32>
    %389 = vector.extract_strided_slice %367 {offsets = [0, 64], sizes = [2, 32], strides = [1, 1]} : vector<2x96xf32> to vector<2x32xf32>
    %390 = vector.extract_strided_slice %368 {offsets = [0, 64], sizes = [2, 32], strides = [1, 1]} : vector<2x96xf32> to vector<2x32xf32>
    %391 = arith.addf %390, %324 : vector<2x32xf32>
    %392 = arith.mulf %378, %391 : vector<2x32xf32>
    %393 = arith.addf %389, %392 : vector<2x32xf32>
    %394 = math.tanh %393 : vector<2x32xf32>
    %cst_131 = arith.constant 1.000000e+00 : f32
    %395 = vector.broadcast %cst_131 : f32 to vector<2x32xf32>
    %396 = arith.subf %395, %388 : vector<2x32xf32>
    %397 = arith.mulf %396, %394 : vector<2x32xf32>
    %398 = arith.mulf %388, %362 : vector<2x32xf32>
    %399 = arith.addf %397, %398 : vector<2x32xf32>
    %c2_i32_132 = arith.constant 2 : i32
    %400 = arith.index_cast %c2_i32_132 : i32 to index
    %c0_133 = arith.constant 0 : index
    %c0_134 = arith.constant 0 : index
    %401 = vector.load %arg10[%400, %c0_133, %c0_134] : memref<8x2x32xf32, #tpu.memory_space<vmem>>, vector<1x2x32xf32>
    %402 = vector.shape_cast %401 : vector<1x2x32xf32> to vector<2x32xf32>
    %cst_135 = arith.constant dense<0.000000e+00> : vector<2x96xf32>
    %403 = tpu.matmul %402, %317, %cst_135 {dimension_numbers = #tpu.dot_dimension_numbers<[1], [0], [0], [1], [0, 0, 1, 1], [], []>} : vector<2x32xf32>, vector<32x96xf32>, vector<2x96xf32> -> vector<2x96xf32>
    %404 = arith.addf %403, %321 : vector<2x96xf32>
    %cst_136 = arith.constant dense<0.000000e+00> : vector<2x96xf32>
    %405 = tpu.matmul %399, %318, %cst_136 {dimension_numbers = #tpu.dot_dimension_numbers<[1], [0], [0], [1], [0, 0, 1, 1], [], []>} : vector<2x32xf32>, vector<32x96xf32>, vector<2x96xf32> -> vector<2x96xf32>
    %406 = vector.extract_strided_slice %404 {offsets = [0, 0], sizes = [2, 32], strides = [1, 1]} : vector<2x96xf32> to vector<2x32xf32>
    %407 = vector.extract_strided_slice %405 {offsets = [0, 0], sizes = [2, 32], strides = [1, 1]} : vector<2x96xf32> to vector<2x32xf32>
    %408 = arith.addf %406, %407 : vector<2x32xf32>
    %cst_137 = arith.constant 5.000000e-01 : f32
    %409 = vector.broadcast %cst_137 : f32 to vector<2x32xf32>
    %410 = arith.mulf %409, %408 : vector<2x32xf32>
    %411 = math.tanh %410 : vector<2x32xf32>
    %cst_138 = arith.constant 5.000000e-01 : f32
    %412 = vector.broadcast %cst_138 : f32 to vector<2x32xf32>
    %413 = arith.mulf %412, %411 : vector<2x32xf32>
    %cst_139 = arith.constant 5.000000e-01 : f32
    %414 = vector.broadcast %cst_139 : f32 to vector<2x32xf32>
    %415 = arith.addf %413, %414 : vector<2x32xf32>
    %416 = vector.extract_strided_slice %404 {offsets = [0, 32], sizes = [2, 32], strides = [1, 1]} : vector<2x96xf32> to vector<2x32xf32>
    %417 = vector.extract_strided_slice %405 {offsets = [0, 32], sizes = [2, 32], strides = [1, 1]} : vector<2x96xf32> to vector<2x32xf32>
    %418 = arith.addf %416, %417 : vector<2x32xf32>
    %cst_140 = arith.constant 5.000000e-01 : f32
    %419 = vector.broadcast %cst_140 : f32 to vector<2x32xf32>
    %420 = arith.mulf %419, %418 : vector<2x32xf32>
    %421 = math.tanh %420 : vector<2x32xf32>
    %cst_141 = arith.constant 5.000000e-01 : f32
    %422 = vector.broadcast %cst_141 : f32 to vector<2x32xf32>
    %423 = arith.mulf %422, %421 : vector<2x32xf32>
    %cst_142 = arith.constant 5.000000e-01 : f32
    %424 = vector.broadcast %cst_142 : f32 to vector<2x32xf32>
    %425 = arith.addf %423, %424 : vector<2x32xf32>
    %426 = vector.extract_strided_slice %404 {offsets = [0, 64], sizes = [2, 32], strides = [1, 1]} : vector<2x96xf32> to vector<2x32xf32>
    %427 = vector.extract_strided_slice %405 {offsets = [0, 64], sizes = [2, 32], strides = [1, 1]} : vector<2x96xf32> to vector<2x32xf32>
    %428 = arith.addf %427, %324 : vector<2x32xf32>
    %429 = arith.mulf %415, %428 : vector<2x32xf32>
    %430 = arith.addf %426, %429 : vector<2x32xf32>
    %431 = math.tanh %430 : vector<2x32xf32>
    %cst_143 = arith.constant 1.000000e+00 : f32
    %432 = vector.broadcast %cst_143 : f32 to vector<2x32xf32>
    %433 = arith.subf %432, %425 : vector<2x32xf32>
    %434 = arith.mulf %433, %431 : vector<2x32xf32>
    %435 = arith.mulf %425, %399 : vector<2x32xf32>
    %436 = arith.addf %434, %435 : vector<2x32xf32>
    %c3_i32_144 = arith.constant 3 : i32
    %437 = arith.index_cast %c3_i32_144 : i32 to index
    %c0_145 = arith.constant 0 : index
    %c0_146 = arith.constant 0 : index
    %438 = vector.load %arg10[%437, %c0_145, %c0_146] : memref<8x2x32xf32, #tpu.memory_space<vmem>>, vector<1x2x32xf32>
    %439 = vector.shape_cast %438 : vector<1x2x32xf32> to vector<2x32xf32>
    %cst_147 = arith.constant dense<0.000000e+00> : vector<2x96xf32>
    %440 = tpu.matmul %439, %317, %cst_147 {dimension_numbers = #tpu.dot_dimension_numbers<[1], [0], [0], [1], [0, 0, 1, 1], [], []>} : vector<2x32xf32>, vector<32x96xf32>, vector<2x96xf32> -> vector<2x96xf32>
    %441 = arith.addf %440, %321 : vector<2x96xf32>
    %cst_148 = arith.constant dense<0.000000e+00> : vector<2x96xf32>
    %442 = tpu.matmul %436, %318, %cst_148 {dimension_numbers = #tpu.dot_dimension_numbers<[1], [0], [0], [1], [0, 0, 1, 1], [], []>} : vector<2x32xf32>, vector<32x96xf32>, vector<2x96xf32> -> vector<2x96xf32>
    %443 = vector.extract_strided_slice %441 {offsets = [0, 0], sizes = [2, 32], strides = [1, 1]} : vector<2x96xf32> to vector<2x32xf32>
    %444 = vector.extract_strided_slice %442 {offsets = [0, 0], sizes = [2, 32], strides = [1, 1]} : vector<2x96xf32> to vector<2x32xf32>
    %445 = arith.addf %443, %444 : vector<2x32xf32>
    %cst_149 = arith.constant 5.000000e-01 : f32
    %446 = vector.broadcast %cst_149 : f32 to vector<2x32xf32>
    %447 = arith.mulf %446, %445 : vector<2x32xf32>
    %448 = math.tanh %447 : vector<2x32xf32>
    %cst_150 = arith.constant 5.000000e-01 : f32
    %449 = vector.broadcast %cst_150 : f32 to vector<2x32xf32>
    %450 = arith.mulf %449, %448 : vector<2x32xf32>
    %cst_151 = arith.constant 5.000000e-01 : f32
    %451 = vector.broadcast %cst_151 : f32 to vector<2x32xf32>
    %452 = arith.addf %450, %451 : vector<2x32xf32>
    %453 = vector.extract_strided_slice %441 {offsets = [0, 32], sizes = [2, 32], strides = [1, 1]} : vector<2x96xf32> to vector<2x32xf32>
    %454 = vector.extract_strided_slice %442 {offsets = [0, 32], sizes = [2, 32], strides = [1, 1]} : vector<2x96xf32> to vector<2x32xf32>
    %455 = arith.addf %453, %454 : vector<2x32xf32>
    %cst_152 = arith.constant 5.000000e-01 : f32
    %456 = vector.broadcast %cst_152 : f32 to vector<2x32xf32>
    %457 = arith.mulf %456, %455 : vector<2x32xf32>
    %458 = math.tanh %457 : vector<2x32xf32>
    %cst_153 = arith.constant 5.000000e-01 : f32
    %459 = vector.broadcast %cst_153 : f32 to vector<2x32xf32>
    %460 = arith.mulf %459, %458 : vector<2x32xf32>
    %cst_154 = arith.constant 5.000000e-01 : f32
    %461 = vector.broadcast %cst_154 : f32 to vector<2x32xf32>
    %462 = arith.addf %460, %461 : vector<2x32xf32>
    %463 = vector.extract_strided_slice %441 {offsets = [0, 64], sizes = [2, 32], strides = [1, 1]} : vector<2x96xf32> to vector<2x32xf32>
    %464 = vector.extract_strided_slice %442 {offsets = [0, 64], sizes = [2, 32], strides = [1, 1]} : vector<2x96xf32> to vector<2x32xf32>
    %465 = arith.addf %464, %324 : vector<2x32xf32>
    %466 = arith.mulf %452, %465 : vector<2x32xf32>
    %467 = arith.addf %463, %466 : vector<2x32xf32>
    %468 = math.tanh %467 : vector<2x32xf32>
    %cst_155 = arith.constant 1.000000e+00 : f32
    %469 = vector.broadcast %cst_155 : f32 to vector<2x32xf32>
    %470 = arith.subf %469, %462 : vector<2x32xf32>
    %471 = arith.mulf %470, %468 : vector<2x32xf32>
    %472 = arith.mulf %462, %436 : vector<2x32xf32>
    %473 = arith.addf %471, %472 : vector<2x32xf32>
    %c4_i32_156 = arith.constant 4 : i32
    %474 = arith.index_cast %c4_i32_156 : i32 to index
    %c0_157 = arith.constant 0 : index
    %c0_158 = arith.constant 0 : index
    %475 = vector.load %arg10[%474, %c0_157, %c0_158] : memref<8x2x32xf32, #tpu.memory_space<vmem>>, vector<1x2x32xf32>
    %476 = vector.shape_cast %475 : vector<1x2x32xf32> to vector<2x32xf32>
    %cst_159 = arith.constant dense<0.000000e+00> : vector<2x96xf32>
    %477 = tpu.matmul %476, %317, %cst_159 {dimension_numbers = #tpu.dot_dimension_numbers<[1], [0], [0], [1], [0, 0, 1, 1], [], []>} : vector<2x32xf32>, vector<32x96xf32>, vector<2x96xf32> -> vector<2x96xf32>
    %478 = arith.addf %477, %321 : vector<2x96xf32>
    %cst_160 = arith.constant dense<0.000000e+00> : vector<2x96xf32>
    %479 = tpu.matmul %473, %318, %cst_160 {dimension_numbers = #tpu.dot_dimension_numbers<[1], [0], [0], [1], [0, 0, 1, 1], [], []>} : vector<2x32xf32>, vector<32x96xf32>, vector<2x96xf32> -> vector<2x96xf32>
    %480 = vector.extract_strided_slice %478 {offsets = [0, 0], sizes = [2, 32], strides = [1, 1]} : vector<2x96xf32> to vector<2x32xf32>
    %481 = vector.extract_strided_slice %479 {offsets = [0, 0], sizes = [2, 32], strides = [1, 1]} : vector<2x96xf32> to vector<2x32xf32>
    %482 = arith.addf %480, %481 : vector<2x32xf32>
    %cst_161 = arith.constant 5.000000e-01 : f32
    %483 = vector.broadcast %cst_161 : f32 to vector<2x32xf32>
    %484 = arith.mulf %483, %482 : vector<2x32xf32>
    %485 = math.tanh %484 : vector<2x32xf32>
    %cst_162 = arith.constant 5.000000e-01 : f32
    %486 = vector.broadcast %cst_162 : f32 to vector<2x32xf32>
    %487 = arith.mulf %486, %485 : vector<2x32xf32>
    %cst_163 = arith.constant 5.000000e-01 : f32
    %488 = vector.broadcast %cst_163 : f32 to vector<2x32xf32>
    %489 = arith.addf %487, %488 : vector<2x32xf32>
    %490 = vector.extract_strided_slice %478 {offsets = [0, 32], sizes = [2, 32], strides = [1, 1]} : vector<2x96xf32> to vector<2x32xf32>
    %491 = vector.extract_strided_slice %479 {offsets = [0, 32], sizes = [2, 32], strides = [1, 1]} : vector<2x96xf32> to vector<2x32xf32>
    %492 = arith.addf %490, %491 : vector<2x32xf32>
    %cst_164 = arith.constant 5.000000e-01 : f32
    %493 = vector.broadcast %cst_164 : f32 to vector<2x32xf32>
    %494 = arith.mulf %493, %492 : vector<2x32xf32>
    %495 = math.tanh %494 : vector<2x32xf32>
    %cst_165 = arith.constant 5.000000e-01 : f32
    %496 = vector.broadcast %cst_165 : f32 to vector<2x32xf32>
    %497 = arith.mulf %496, %495 : vector<2x32xf32>
    %cst_166 = arith.constant 5.000000e-01 : f32
    %498 = vector.broadcast %cst_166 : f32 to vector<2x32xf32>
    %499 = arith.addf %497, %498 : vector<2x32xf32>
    %500 = vector.extract_strided_slice %478 {offsets = [0, 64], sizes = [2, 32], strides = [1, 1]} : vector<2x96xf32> to vector<2x32xf32>
    %501 = vector.extract_strided_slice %479 {offsets = [0, 64], sizes = [2, 32], strides = [1, 1]} : vector<2x96xf32> to vector<2x32xf32>
    %502 = arith.addf %501, %324 : vector<2x32xf32>
    %503 = arith.mulf %489, %502 : vector<2x32xf32>
    %504 = arith.addf %500, %503 : vector<2x32xf32>
    %505 = math.tanh %504 : vector<2x32xf32>
    %cst_167 = arith.constant 1.000000e+00 : f32
    %506 = vector.broadcast %cst_167 : f32 to vector<2x32xf32>
    %507 = arith.subf %506, %499 : vector<2x32xf32>
    %508 = arith.mulf %507, %505 : vector<2x32xf32>
    %509 = arith.mulf %499, %473 : vector<2x32xf32>
    %510 = arith.addf %508, %509 : vector<2x32xf32>
    %c5_i32_168 = arith.constant 5 : i32
    %511 = arith.index_cast %c5_i32_168 : i32 to index
    %c0_169 = arith.constant 0 : index
    %c0_170 = arith.constant 0 : index
    %512 = vector.load %arg10[%511, %c0_169, %c0_170] : memref<8x2x32xf32, #tpu.memory_space<vmem>>, vector<1x2x32xf32>
    %513 = vector.shape_cast %512 : vector<1x2x32xf32> to vector<2x32xf32>
    %cst_171 = arith.constant dense<0.000000e+00> : vector<2x96xf32>
    %514 = tpu.matmul %513, %317, %cst_171 {dimension_numbers = #tpu.dot_dimension_numbers<[1], [0], [0], [1], [0, 0, 1, 1], [], []>} : vector<2x32xf32>, vector<32x96xf32>, vector<2x96xf32> -> vector<2x96xf32>
    %515 = arith.addf %514, %321 : vector<2x96xf32>
    %cst_172 = arith.constant dense<0.000000e+00> : vector<2x96xf32>
    %516 = tpu.matmul %510, %318, %cst_172 {dimension_numbers = #tpu.dot_dimension_numbers<[1], [0], [0], [1], [0, 0, 1, 1], [], []>} : vector<2x32xf32>, vector<32x96xf32>, vector<2x96xf32> -> vector<2x96xf32>
    %517 = vector.extract_strided_slice %515 {offsets = [0, 0], sizes = [2, 32], strides = [1, 1]} : vector<2x96xf32> to vector<2x32xf32>
    %518 = vector.extract_strided_slice %516 {offsets = [0, 0], sizes = [2, 32], strides = [1, 1]} : vector<2x96xf32> to vector<2x32xf32>
    %519 = arith.addf %517, %518 : vector<2x32xf32>
    %cst_173 = arith.constant 5.000000e-01 : f32
    %520 = vector.broadcast %cst_173 : f32 to vector<2x32xf32>
    %521 = arith.mulf %520, %519 : vector<2x32xf32>
    %522 = math.tanh %521 : vector<2x32xf32>
    %cst_174 = arith.constant 5.000000e-01 : f32
    %523 = vector.broadcast %cst_174 : f32 to vector<2x32xf32>
    %524 = arith.mulf %523, %522 : vector<2x32xf32>
    %cst_175 = arith.constant 5.000000e-01 : f32
    %525 = vector.broadcast %cst_175 : f32 to vector<2x32xf32>
    %526 = arith.addf %524, %525 : vector<2x32xf32>
    %527 = vector.extract_strided_slice %515 {offsets = [0, 32], sizes = [2, 32], strides = [1, 1]} : vector<2x96xf32> to vector<2x32xf32>
    %528 = vector.extract_strided_slice %516 {offsets = [0, 32], sizes = [2, 32], strides = [1, 1]} : vector<2x96xf32> to vector<2x32xf32>
    %529 = arith.addf %527, %528 : vector<2x32xf32>
    %cst_176 = arith.constant 5.000000e-01 : f32
    %530 = vector.broadcast %cst_176 : f32 to vector<2x32xf32>
    %531 = arith.mulf %530, %529 : vector<2x32xf32>
    %532 = math.tanh %531 : vector<2x32xf32>
    %cst_177 = arith.constant 5.000000e-01 : f32
    %533 = vector.broadcast %cst_177 : f32 to vector<2x32xf32>
    %534 = arith.mulf %533, %532 : vector<2x32xf32>
    %cst_178 = arith.constant 5.000000e-01 : f32
    %535 = vector.broadcast %cst_178 : f32 to vector<2x32xf32>
    %536 = arith.addf %534, %535 : vector<2x32xf32>
    %537 = vector.extract_strided_slice %515 {offsets = [0, 64], sizes = [2, 32], strides = [1, 1]} : vector<2x96xf32> to vector<2x32xf32>
    %538 = vector.extract_strided_slice %516 {offsets = [0, 64], sizes = [2, 32], strides = [1, 1]} : vector<2x96xf32> to vector<2x32xf32>
    %539 = arith.addf %538, %324 : vector<2x32xf32>
    %540 = arith.mulf %526, %539 : vector<2x32xf32>
    %541 = arith.addf %537, %540 : vector<2x32xf32>
    %542 = math.tanh %541 : vector<2x32xf32>
    %cst_179 = arith.constant 1.000000e+00 : f32
    %543 = vector.broadcast %cst_179 : f32 to vector<2x32xf32>
    %544 = arith.subf %543, %536 : vector<2x32xf32>
    %545 = arith.mulf %544, %542 : vector<2x32xf32>
    %546 = arith.mulf %536, %510 : vector<2x32xf32>
    %547 = arith.addf %545, %546 : vector<2x32xf32>
    %c6_i32_180 = arith.constant 6 : i32
    %548 = arith.index_cast %c6_i32_180 : i32 to index
    %c0_181 = arith.constant 0 : index
    %c0_182 = arith.constant 0 : index
    %549 = vector.load %arg10[%548, %c0_181, %c0_182] : memref<8x2x32xf32, #tpu.memory_space<vmem>>, vector<1x2x32xf32>
    %550 = vector.shape_cast %549 : vector<1x2x32xf32> to vector<2x32xf32>
    %cst_183 = arith.constant dense<0.000000e+00> : vector<2x96xf32>
    %551 = tpu.matmul %550, %317, %cst_183 {dimension_numbers = #tpu.dot_dimension_numbers<[1], [0], [0], [1], [0, 0, 1, 1], [], []>} : vector<2x32xf32>, vector<32x96xf32>, vector<2x96xf32> -> vector<2x96xf32>
    %552 = arith.addf %551, %321 : vector<2x96xf32>
    %cst_184 = arith.constant dense<0.000000e+00> : vector<2x96xf32>
    %553 = tpu.matmul %547, %318, %cst_184 {dimension_numbers = #tpu.dot_dimension_numbers<[1], [0], [0], [1], [0, 0, 1, 1], [], []>} : vector<2x32xf32>, vector<32x96xf32>, vector<2x96xf32> -> vector<2x96xf32>
    %554 = vector.extract_strided_slice %552 {offsets = [0, 0], sizes = [2, 32], strides = [1, 1]} : vector<2x96xf32> to vector<2x32xf32>
    %555 = vector.extract_strided_slice %553 {offsets = [0, 0], sizes = [2, 32], strides = [1, 1]} : vector<2x96xf32> to vector<2x32xf32>
    %556 = arith.addf %554, %555 : vector<2x32xf32>
    %cst_185 = arith.constant 5.000000e-01 : f32
    %557 = vector.broadcast %cst_185 : f32 to vector<2x32xf32>
    %558 = arith.mulf %557, %556 : vector<2x32xf32>
    %559 = math.tanh %558 : vector<2x32xf32>
    %cst_186 = arith.constant 5.000000e-01 : f32
    %560 = vector.broadcast %cst_186 : f32 to vector<2x32xf32>
    %561 = arith.mulf %560, %559 : vector<2x32xf32>
    %cst_187 = arith.constant 5.000000e-01 : f32
    %562 = vector.broadcast %cst_187 : f32 to vector<2x32xf32>
    %563 = arith.addf %561, %562 : vector<2x32xf32>
    %564 = vector.extract_strided_slice %552 {offsets = [0, 32], sizes = [2, 32], strides = [1, 1]} : vector<2x96xf32> to vector<2x32xf32>
    %565 = vector.extract_strided_slice %553 {offsets = [0, 32], sizes = [2, 32], strides = [1, 1]} : vector<2x96xf32> to vector<2x32xf32>
    %566 = arith.addf %564, %565 : vector<2x32xf32>
    %cst_188 = arith.constant 5.000000e-01 : f32
    %567 = vector.broadcast %cst_188 : f32 to vector<2x32xf32>
    %568 = arith.mulf %567, %566 : vector<2x32xf32>
    %569 = math.tanh %568 : vector<2x32xf32>
    %cst_189 = arith.constant 5.000000e-01 : f32
    %570 = vector.broadcast %cst_189 : f32 to vector<2x32xf32>
    %571 = arith.mulf %570, %569 : vector<2x32xf32>
    %cst_190 = arith.constant 5.000000e-01 : f32
    %572 = vector.broadcast %cst_190 : f32 to vector<2x32xf32>
    %573 = arith.addf %571, %572 : vector<2x32xf32>
    %574 = vector.extract_strided_slice %552 {offsets = [0, 64], sizes = [2, 32], strides = [1, 1]} : vector<2x96xf32> to vector<2x32xf32>
    %575 = vector.extract_strided_slice %553 {offsets = [0, 64], sizes = [2, 32], strides = [1, 1]} : vector<2x96xf32> to vector<2x32xf32>
    %576 = arith.addf %575, %324 : vector<2x32xf32>
    %577 = arith.mulf %563, %576 : vector<2x32xf32>
    %578 = arith.addf %574, %577 : vector<2x32xf32>
    %579 = math.tanh %578 : vector<2x32xf32>
    %cst_191 = arith.constant 1.000000e+00 : f32
    %580 = vector.broadcast %cst_191 : f32 to vector<2x32xf32>
    %581 = arith.subf %580, %573 : vector<2x32xf32>
    %582 = arith.mulf %581, %579 : vector<2x32xf32>
    %583 = arith.mulf %573, %547 : vector<2x32xf32>
    %584 = arith.addf %582, %583 : vector<2x32xf32>
    %c7_i32_192 = arith.constant 7 : i32
    %585 = arith.index_cast %c7_i32_192 : i32 to index
    %c0_193 = arith.constant 0 : index
    %c0_194 = arith.constant 0 : index
    %586 = vector.load %arg10[%585, %c0_193, %c0_194] : memref<8x2x32xf32, #tpu.memory_space<vmem>>, vector<1x2x32xf32>
    %587 = vector.shape_cast %586 : vector<1x2x32xf32> to vector<2x32xf32>
    %cst_195 = arith.constant dense<0.000000e+00> : vector<2x96xf32>
    %588 = tpu.matmul %587, %317, %cst_195 {dimension_numbers = #tpu.dot_dimension_numbers<[1], [0], [0], [1], [0, 0, 1, 1], [], []>} : vector<2x32xf32>, vector<32x96xf32>, vector<2x96xf32> -> vector<2x96xf32>
    %589 = arith.addf %588, %321 : vector<2x96xf32>
    %cst_196 = arith.constant dense<0.000000e+00> : vector<2x96xf32>
    %590 = tpu.matmul %584, %318, %cst_196 {dimension_numbers = #tpu.dot_dimension_numbers<[1], [0], [0], [1], [0, 0, 1, 1], [], []>} : vector<2x32xf32>, vector<32x96xf32>, vector<2x96xf32> -> vector<2x96xf32>
    %591 = vector.extract_strided_slice %589 {offsets = [0, 0], sizes = [2, 32], strides = [1, 1]} : vector<2x96xf32> to vector<2x32xf32>
    %592 = vector.extract_strided_slice %590 {offsets = [0, 0], sizes = [2, 32], strides = [1, 1]} : vector<2x96xf32> to vector<2x32xf32>
    %593 = arith.addf %591, %592 : vector<2x32xf32>
    %cst_197 = arith.constant 5.000000e-01 : f32
    %594 = vector.broadcast %cst_197 : f32 to vector<2x32xf32>
    %595 = arith.mulf %594, %593 : vector<2x32xf32>
    %596 = math.tanh %595 : vector<2x32xf32>
    %cst_198 = arith.constant 5.000000e-01 : f32
    %597 = vector.broadcast %cst_198 : f32 to vector<2x32xf32>
    %598 = arith.mulf %597, %596 : vector<2x32xf32>
    %cst_199 = arith.constant 5.000000e-01 : f32
    %599 = vector.broadcast %cst_199 : f32 to vector<2x32xf32>
    %600 = arith.addf %598, %599 : vector<2x32xf32>
    %601 = vector.extract_strided_slice %589 {offsets = [0, 32], sizes = [2, 32], strides = [1, 1]} : vector<2x96xf32> to vector<2x32xf32>
    %602 = vector.extract_strided_slice %590 {offsets = [0, 32], sizes = [2, 32], strides = [1, 1]} : vector<2x96xf32> to vector<2x32xf32>
    %603 = arith.addf %601, %602 : vector<2x32xf32>
    %cst_200 = arith.constant 5.000000e-01 : f32
    %604 = vector.broadcast %cst_200 : f32 to vector<2x32xf32>
    %605 = arith.mulf %604, %603 : vector<2x32xf32>
    %606 = math.tanh %605 : vector<2x32xf32>
    %cst_201 = arith.constant 5.000000e-01 : f32
    %607 = vector.broadcast %cst_201 : f32 to vector<2x32xf32>
    %608 = arith.mulf %607, %606 : vector<2x32xf32>
    %cst_202 = arith.constant 5.000000e-01 : f32
    %609 = vector.broadcast %cst_202 : f32 to vector<2x32xf32>
    %610 = arith.addf %608, %609 : vector<2x32xf32>
    %611 = vector.extract_strided_slice %589 {offsets = [0, 64], sizes = [2, 32], strides = [1, 1]} : vector<2x96xf32> to vector<2x32xf32>
    %612 = vector.extract_strided_slice %590 {offsets = [0, 64], sizes = [2, 32], strides = [1, 1]} : vector<2x96xf32> to vector<2x32xf32>
    %613 = arith.addf %612, %324 : vector<2x32xf32>
    %614 = arith.mulf %600, %613 : vector<2x32xf32>
    %615 = arith.addf %611, %614 : vector<2x32xf32>
    %616 = math.tanh %615 : vector<2x32xf32>
    %cst_203 = arith.constant 1.000000e+00 : f32
    %617 = vector.broadcast %cst_203 : f32 to vector<2x32xf32>
    %618 = arith.subf %617, %610 : vector<2x32xf32>
    %619 = arith.mulf %618, %616 : vector<2x32xf32>
    %620 = arith.mulf %610, %584 : vector<2x32xf32>
    %621 = arith.addf %619, %620 : vector<2x32xf32>
    %c8_i32_204 = arith.constant 8 : i32
    %c0_205 = arith.constant 0 : index
    %c0_206 = arith.constant 0 : index
    %622 = vector.load %arg7[%c0_205, %c0_206] : memref<32x10xf32, #tpu.memory_space<vmem>>, vector<32x10xf32>
    %c0_207 = arith.constant 0 : index
    %c0_208 = arith.constant 0 : index
    %623 = vector.load %arg8[%c0_207, %c0_208] : memref<1x10xf32, #tpu.memory_space<vmem>>, vector<1x10xf32>
    %cst_209 = arith.constant dense<0.000000e+00> : vector<2x10xf32>
    %624 = tpu.matmul %621, %622, %cst_209 {dimension_numbers = #tpu.dot_dimension_numbers<[1], [0], [0], [1], [0, 0, 1, 1], [], []>} : vector<2x32xf32>, vector<32x10xf32>, vector<2x10xf32> -> vector<2x10xf32>
    %625 = vector.broadcast %623 : vector<1x10xf32> to vector<2x10xf32>
    %626 = arith.addf %624, %625 : vector<2x10xf32>
    %c0_210 = arith.constant 0 : index
    %c0_211 = arith.constant 0 : index
    %627 = vector.load %arg9[%c0_210, %c0_211] : memref<2x10xf32, #tpu.memory_space<vmem>>, vector<2x10xf32>
    tpu.vector_store %arg9[%c0_210, %c0_211], %626 {strides = array<i32>} : memref<2x10xf32, #tpu.memory_space<vmem>>, vector<2x10xf32>,
    return
  }
}

</mosaic_0001>

<llo_original>
// kernel: gru_model_forward.1
$region0: #{gru_model_forward.1}
  #allocation0 [shape = 'u32[]', space=smem, size = 0x4, offset = 0x4, fixed_abs, tag = 'smem constant byte address 0x4 - core index']
  #allocation1 [shape = 'u32[72,128]{1,0:T(1,128)}', space=vmem, size = 0x9000, scoped, tag = 'internal scratch']
  #allocation2 [shape = 'f32[8,2,32]{2,1,0:T(2,128)}', space=vmem, size = 0x2000, scoped, tag = 'scratch operand']
  %s0 = inlined_call_operand.vmem [shape: f32[8,2,96], index: 0, kind: input, shape index: {}]
  %s1 = inlined_call_operand.vmem [shape: f32[32,96], index: 1, kind: input, shape index: {}]
  %s2 = inlined_call_operand.vmem [shape: f32[1,32], index: 2, kind: input, shape index: {}]
  %s3 = inlined_call_operand.hbm [shape: f32[32,96], index: 3, kind: input, shape index: {}]
  %s4 = inlined_call_operand.hbm [shape: f32[32,96], index: 4, kind: input, shape index: {}]
  %s5 = inlined_call_operand.vmem [shape: f32[1,96], index: 5, kind: input, shape index: {}]
  %s6 = inlined_call_operand.vmem [shape: f32[1,32], index: 6, kind: input, shape index: {}]
  %s7 = inlined_call_operand.vmem [shape: f32[32,10], index: 7, kind: input, shape index: {}]
  %s8 = inlined_call_operand.vmem [shape: f32[1,10], index: 8, kind: input, shape index: {}]
  %s9 = inlined_call_operand.hbm [shape: f32[2,10], index: 9, kind: output, shape index: {}]
  %s10 = sld [smem:[#allocation0]]
  $region54: #{gru_model_forward.1} parent=0
    _
  %s12 = ssub.s32 1, %s10
  %s13 = scalar_select 0, %s12, %s10
  $region1: #{gru_model_forward.1} parent=0
    #allocation3 [shape = 'u8[16384]{0}', space=vmem, size = 0x4000, scoped, tag = 'input window, operand 3, single buffered']
    #allocation4 [shape = 's32[1]{0}', space=sflag, size = 0x4, scoped, tag = 'scoped memory for gru_model_forward.1']
    #allocation5 [shape = 's32[1]{0}', space=sflag, size = 0x4, scoped, tag = 'scoped memory for gru_model_forward.1']
    #allocation6 [shape = 'u8[16384]{0}', space=vmem, size = 0x4000, scoped, tag = 'input window, operand 4, single buffered']
    #allocation7 [shape = 's32[1]{0}', space=sflag, size = 0x4, scoped, tag = 'scoped memory for gru_model_forward.1']
    #allocation8 [shape = 'u8[1024]{0}', space=vmem, size = 0x400, scoped, tag = 'output window, operand 0, single buffered']
    %14 = vsyncpa [#allocation4], 0
    %15 = vsyncpa [#allocation7], 0
    %16 = vsyncpa [#allocation5], 0
    // Predicated region
    $region2: #{gru_model_forward.1} parent=1 // pred_check
      _
    $region3: #{gru_model_forward.1} parent=1 // pred_check_branch
      %18 = sbr.rel (0) target = $region5
    $region4: #{gru_model_forward.1} parent=1 // pred_region
      _
    $region5: #{gru_model_forward.1} parent=1 // pred_fallthru
      _
    // Predicated region
    $region6: #{gru_model_forward.1} parent=1 // pred_check
      _
    $region7: #{gru_model_forward.1} parent=1 // pred_check_branch
      %20 = sbr.rel (0) target = $region9
    $region8: #{gru_model_forward.1} parent=1 // pred_region
      _
    $region9: #{gru_model_forward.1} parent=1 // pred_fallthru
      _
    // Predicated region
    $region10: #{gru_model_forward.1} parent=1 // pred_check
      _
    $region11: #{gru_model_forward.1} parent=1 // pred_check_branch
      %22 = sbr.rel (0) target = $region13
    $region12: #{gru_model_forward.1} parent=1 // pred_region
      _
    $region13: #{gru_model_forward.1} parent=1 // pred_fallthru
      _
    // Predicated region
    $region14: #{gru_model_forward.1} parent=1 // pred_check
      _
    $region15: #{gru_model_forward.1} parent=1 // pred_check_branch
      %24 = sbr.rel (0) target = $region17
    $region16: #{gru_model_forward.1} parent=1 // pred_region
      %26 = vsyncadd [#allocation4], 0
      %s27 = sshll.u32 %s3, 4
      %s28 = int_to_ptr.hbm [resolvable:$true] %s27
      %s29 = sshll.u32 [#allocation3], 4
      %s30 = int_to_ptr.vmem [resolvable:$true] %s29
      %35 = dma.hbm_to_vmem [thread:$0]  %s28, 512, %s30, [#allocation4], 128, 128, 8
    $region17: #{gru_model_forward.1} parent=1 // pred_fallthru
      _
    // Predicated region
    $region18: #{gru_model_forward.1} parent=1 // pred_check
      _
    $region19: #{gru_model_forward.1} parent=1 // pred_check_branch
      %37 = sbr.rel (0) target = $region21
    $region20: #{gru_model_forward.1} parent=1 // pred_region
      %39 = vsyncadd [#allocation7], 0
      %s40 = sshll.u32 %s4, 4
      %s41 = int_to_ptr.hbm [resolvable:$true] %s40
      %s42 = sshll.u32 [#allocation6], 4
      %s43 = int_to_ptr.vmem [resolvable:$true] %s42
      %48 = dma.hbm_to_vmem [thread:$0]  %s41, 512, %s43, [#allocation7], 128, 128, 8
    $region21: #{gru_model_forward.1} parent=1 // pred_fallthru
      _
    // Predicated region
    $region22: #{gru_model_forward.1} parent=1 // pred_check
      _
    $region23: #{gru_model_forward.1} parent=1 // pred_check_branch
      %50 = sbr.rel (0) target = $region25
    $region24: #{gru_model_forward.1} parent=1 // pred_region
      _
    $region25: #{gru_model_forward.1} parent=1 // pred_fallthru
      _
    // Predicated region
    $region26: #{gru_model_forward.1} parent=1 // pred_check
      _
    $region27: #{gru_model_forward.1} parent=1 // pred_check_branch
      %52 = sbr.rel (0) target = $region29
    $region28: #{gru_model_forward.1} parent=1 // pred_region
      _
    $region29: #{gru_model_forward.1} parent=1 // pred_fallthru
      _
    // Predicated region
    $region30: #{gru_model_forward.1} parent=1 // pred_check
      _
    $region31: #{gru_model_forward.1} parent=1 // pred_check_branch
      %54 = sbr.rel (0) target = $region33
    $region32: #{gru_model_forward.1} parent=1 // pred_region
      _
    $region33: #{gru_model_forward.1} parent=1 // pred_fallthru
      _
    // Predicated region
    $region34: #{gru_model_forward.1} parent=1 // pred_check
      _
    $region35: #{gru_model_forward.1} parent=1 // pred_check_branch
      %56 = sbr.rel (0) target = $region37
    $region36: #{gru_model_forward.1} parent=1 // pred_region
      _
    $region37: #{gru_model_forward.1} parent=1 // pred_fallthru
      _
    // Predicated region
    $region38: #{gru_model_forward.1} parent=1 // pred_check
      _
    $region39: #{gru_model_forward.1} parent=1 // pred_check_branch
      %58 = sbr.rel (0) target = $region41
    $region40: #{gru_model_forward.1} parent=1 // pred_region
      %60 = dma.done [#allocation4], 512
    $region41: #{gru_model_forward.1} parent=1 // pred_fallthru
      _
    // Predicated region
    $region42: #{gru_model_forward.1} parent=1 // pred_check
      _
    $region43: #{gru_model_forward.1} parent=1 // pred_check_branch
      %62 = sbr.rel (0) target = $region45
    $region44: #{gru_model_forward.1} parent=1 // pred_region
      %64 = dma.done [#allocation7], 512
    $region45: #{gru_model_forward.1} parent=1 // pred_fallthru
      _
    %v65 = vld [vmem:[%s1] sm:$0xff]
    %v66 = vld [vmem:[%s1 + $0x8] sm:$0xff]
    %v67 = vld [vmem:[%s1 + $0x10] sm:$0xff]
    %v68 = vld [vmem:[%s1 + $0x18] sm:$0xff]
    %v69 = vld [vmem:[%s2] sm:$0x1]
    %v71 = vperm.slane %v69, 0
    %v72 = vld [vmem:[%s0] sm:$0x3]
    %vm73 = vcmask 261120
    %v75 = vsel %vm73, 0.0, 0
    %77 = vmatpush.msra.mxu0 0.0
    %78 = vmatpush.msra.mxu0 0.0
    %79 = vmatpush.msra.mxu0 0.0
    %80 = vmatpush.msra.mxu0 0.0
    %81 = vmatpush.msra.mxu0 0.0
    %82 = vmatpush.msra.mxu0 0.0
    %83 = vmatpush.msra.mxu0 0.0
    %84 = vmatpush.msra.mxu0 0.0
    %85 = vmatpush.msra.mxu0 0.0
    %86 = vmatpush.msra.mxu0 0.0
    %87 = vmatpush.msra.mxu0 0.0
    %88 = vmatpush.msra.mxu0 0.0
    %89 = vmatpush.msra.mxu0 %v68
    %90 = vmatpush.msra.mxu0 %v67
    %91 = vmatpush.msra.mxu0 %v66
    %92 = vmatpush.msra.mxu0 %v65
    %93 = vmatmul.f32.gmra.mxu0 %v75
    %v94 = vpop.f32.mrf.mxu0
    %v95 = vadd.f32 0.0, %v94
    %96 = vdwg.mxu0
    %v97 = vadd.f32 %v72, %v95
    %v98 = vmul.f32 %v97, 0.5
    %v99 = vtanh.pop %v98
    %v100 = vmul.f32 %v99, 0.5
    %v101 = vadd.f32 %v100, 0.5
    %102 = vrot.lane.b32.xlu0 %v71, 64
    %v103 = vpop.permute.xlu0 %102
    %v105 = vadd.f32 %v95, %v103
    %107 = vrot.lane.b32.xlu0 %v105, 64
    %v108 = vpop.permute.xlu0 %107
    %v110 = vmul.f32 %v101, %v108
    %112 = vrot.lane.b32.xlu0 %v110, 64
    %v113 = vpop.permute.xlu0 %112
    %v115 = vadd.f32 %v72, %v113
    %v116 = vtanh.pop %v115
    %v117 = vsub.f32 1.0, %v101
    %119 = vrot.lane.b32.xlu0 %v116, 96
    %v120 = vpop.permute.xlu0 %119
    %v122 = vmul.f32 %v117, %v120
    %v123 = vmul.f32 %v101, 0.0
    %v124 = vadd.f32 %v122, %v123
    %126 = vrot.lane.b32.xlu0 %v124, 96
    %v127 = vpop.permute.xlu0 %126
    %vm129 = vcmask 254976
    %130 = vst.msk [vmem:[#allocation2] sm:$0x3] %vm129, %v127
    %s131 = scalar_lea.vmem %s0, 2
    %v132 = vld [vmem:[%s131] sm:$0x3]
    %v133 = vsel %vm73, %v127, 0
    %135 = vmatpush.msra.mxu0 0.0
    %136 = vmatpush.msra.mxu0 0.0
    %137 = vmatpush.msra.mxu0 0.0
    %138 = vmatpush.msra.mxu0 0.0
    %139 = vmatpush.msra.mxu0 0.0
    %140 = vmatpush.msra.mxu0 0.0
    %141 = vmatpush.msra.mxu0 0.0
    %142 = vmatpush.msra.mxu0 0.0
    %143 = vmatpush.msra.mxu0 0.0
    %144 = vmatpush.msra.mxu0 0.0
    %145 = vmatpush.msra.mxu0 0.0
    %146 = vmatpush.msra.mxu0 0.0
    %147 = vmatpush.msra.mxu0 %v68
    %148 = vmatpush.msra.mxu0 %v67
    %149 = vmatpush.msra.mxu0 %v66
    %150 = vmatpush.msra.mxu0 %v65
    %151 = vmatmul.f32.gmra.mxu0 %v133
    %v152 = vpop.f32.mrf.mxu0
    %v153 = vadd.f32 0.0, %v152
    %154 = vdwg.mxu0
    %v155 = vadd.f32 %v132, %v153
    %v156 = vmul.f32 %v155, 0.5
    %v157 = vtanh.pop %v156
    %v158 = vmul.f32 %v157, 0.5
    %v159 = vadd.f32 %v158, 0.5
    %v160 = vadd.f32 %v153, %v103
    %162 = vrot.lane.b32.xlu0 %v160, 64
    %v163 = vpop.permute.xlu0 %162
    %v165 = vmul.f32 %v159, %v163
    %167 = vrot.lane.b32.xlu0 %v165, 64
    %v168 = vpop.permute.xlu0 %167
    %v170 = vadd.f32 %v132, %v168
    %v171 = vtanh.pop %v170
    %v172 = vsub.f32 1.0, %v159
    %174 = vrot.lane.b32.xlu0 %v171, 96
    %v175 = vpop.permute.xlu0 %174
    %v177 = vmul.f32 %v172, %v175
    %v178 = vmul.f32 %v159, %v124
    %v179 = vadd.f32 %v177, %v178
    %181 = vrot.lane.b32.xlu0 %v179, 96
    %v182 = vpop.permute.xlu0 %181
    %s184 = scalar_lea.vmem [#allocation2], 2
    %185 = vst.msk [vmem:[%s184] sm:$0x3] %vm129, %v182
    %s186 = scalar_lea.vmem %s0, 4
    %v187 = vld [vmem:[%s186] sm:$0x3]
    %v188 = vsel %vm73, %v182, 0
    %190 = vmatpush.msra.mxu0 0.0
    %191 = vmatpush.msra.mxu0 0.0
    %192 = vmatpush.msra.mxu0 0.0
    %193 = vmatpush.msra.mxu0 0.0
    %194 = vmatpush.msra.mxu0 0.0
    %195 = vmatpush.msra.mxu0 0.0
    %196 = vmatpush.msra.mxu0 0.0
    %197 = vmatpush.msra.mxu0 0.0
    %198 = vmatpush.msra.mxu0 0.0
    %199 = vmatpush.msra.mxu0 0.0
    %200 = vmatpush.msra.mxu0 0.0
    %201 = vmatpush.msra.mxu0 0.0
    %202 = vmatpush.msra.mxu0 %v68
    %203 = vmatpush.msra.mxu0 %v67
    %204 = vmatpush.msra.mxu0 %v66
    %205 = vmatpush.msra.mxu0 %v65
    %206 = vmatmul.f32.gmra.mxu0 %v188
    %v207 = vpop.f32.mrf.mxu0
    %v208 = vadd.f32 0.0, %v207
    %209 = vdwg.mxu0
    %v210 = vadd.f32 %v187, %v208
    %v211 = vmul.f32 %v210, 0.5
    %v212 = vtanh.pop %v211
    %v213 = vmul.f32 %v212, 0.5
    %v214 = vadd.f32 %v213, 0.5
    %v215 = vadd.f32 %v208, %v103
    %217 = vrot.lane.b32.xlu0 %v215, 64
    %v218 = vpop.permute.xlu0 %217
    %v220 = vmul.f32 %v214, %v218
    %222 = vrot.lane.b32.xlu0 %v220, 64
    %v223 = vpop.permute.xlu0 %222
    %v225 = vadd.f32 %v187, %v223
    %v226 = vtanh.pop %v225
    %v227 = vsub.f32 1.0, %v214
    %229 = vrot.lane.b32.xlu0 %v226, 96
    %v230 = vpop.permute.xlu0 %229
    %v232 = vmul.f32 %v227, %v230
    %v233 = vmul.f32 %v214, %v179
    %v234 = vadd.f32 %v232, %v233
    %236 = vrot.lane.b32.xlu0 %v234, 96
    %v237 = vpop.permute.xlu0 %236
    %s239 = scalar_lea.vmem [#allocation2], 4
    %240 = vst.msk [vmem:[%s239] sm:$0x3] %vm129, %v237
    %s241 = scalar_lea.vmem %s0, 6
    %v242 = vld [vmem:[%s241] sm:$0x3]
    %v243 = vsel %vm73, %v237, 0
    %245 = vmatpush.msra.mxu0 0.0
    %246 = vmatpush.msra.mxu0 0.0
    %247 = vmatpush.msra.mxu0 0.0
    %248 = vmatpush.msra.mxu0 0.0
    %249 = vmatpush.msra.mxu0 0.0
    %250 = vmatpush.msra.mxu0 0.0
    %251 = vmatpush.msra.mxu0 0.0
    %252 = vmatpush.msra.mxu0 0.0
    %253 = vmatpush.msra.mxu0 0.0
    %254 = vmatpush.msra.mxu0 0.0
    %255 = vmatpush.msra.mxu0 0.0
    %256 = vmatpush.msra.mxu0 0.0
    %257 = vmatpush.msra.mxu0 %v68
    %258 = vmatpush.msra.mxu0 %v67
    %259 = vmatpush.msra.mxu0 %v66
    %260 = vmatpush.msra.mxu0 %v65
    %261 = vmatmul.f32.gmra.mxu0 %v243
    %v262 = vpop.f32.mrf.mxu0
    %v263 = vadd.f32 0.0, %v262
    %264 = vdwg.mxu0
    %v265 = vadd.f32 %v242, %v263
    %v266 = vmul.f32 %v265, 0.5
    %v267 = vtanh.pop %v266
    %v268 = vmul.f32 %v267, 0.5
    %v269 = vadd.f32 %v268, 0.5
    %v270 = vadd.f32 %v263, %v103
    %272 = vrot.lane.b32.xlu0 %v270, 64
    %v273 = vpop.permute.xlu0 %272
    %v275 = vmul.f32 %v269, %v273
    %277 = vrot.lane.b32.xlu0 %v275, 64
    %v278 = vpop.permute.xlu0 %277
    %v280 = vadd.f32 %v242, %v278
    %v281 = vtanh.pop %v280
    %v282 = vsub.f32 1.0, %v269
    %284 = vrot.lane.b32.xlu0 %v281, 96
    %v285 = vpop.permute.xlu0 %284
    %v287 = vmul.f32 %v282, %v285
    %v288 = vmul.f32 %v269, %v234
    %v289 = vadd.f32 %v287, %v288
    %291 = vrot.lane.b32.xlu0 %v289, 96
    %v292 = vpop.permute.xlu0 %291
    %s294 = scalar_lea.vmem [#allocation2], 6
    %295 = vst.msk [vmem:[%s294] sm:$0x3] %vm129, %v292
    %s296 = scalar_lea.vmem %s0, 8
    %v297 = vld [vmem:[%s296] sm:$0x3]
    %v298 = vsel %vm73, %v292, 0
    %300 = vmatpush.msra.mxu0 0.0
    %301 = vmatpush.msra.mxu0 0.0
    %302 = vmatpush.msra.mxu0 0.0
    %303 = vmatpush.msra.mxu0 0.0
    %304 = vmatpush.msra.mxu0 0.0
    %305 = vmatpush.msra.mxu0 0.0
    %306 = vmatpush.msra.mxu0 0.0
    %307 = vmatpush.msra.mxu0 0.0
    %308 = vmatpush.msra.mxu0 0.0
    %309 = vmatpush.msra.mxu0 0.0
    %310 = vmatpush.msra.mxu0 0.0
    %311 = vmatpush.msra.mxu0 0.0
    %312 = vmatpush.msra.mxu0 %v68
    %313 = vmatpush.msra.mxu0 %v67
    %314 = vmatpush.msra.mxu0 %v66
    %315 = vmatpush.msra.mxu0 %v65
    %316 = vmatmul.f32.gmra.mxu0 %v298
    %v317 = vpop.f32.mrf.mxu0
    %v318 = vadd.f32 0.0, %v317
    %319 = vdwg.mxu0
    %v320 = vadd.f32 %v297, %v318
    %v321 = vmul.f32 %v320, 0.5
    %v322 = vtanh.pop %v321
    %v323 = vmul.f32 %v322, 0.5
    %v324 = vadd.f32 %v323, 0.5
    %v325 = vadd.f32 %v318, %v103
    %327 = vrot.lane.b32.xlu0 %v325, 64
    %v328 = vpop.permute.xlu0 %327
    %v330 = vmul.f32 %v324, %v328
    %332 = vrot.lane.b32.xlu0 %v330, 64
    %v333 = vpop.permute.xlu0 %332
    %v335 = vadd.f32 %v297, %v333
    %v336 = vtanh.pop %v335
    %v337 = vsub.f32 1.0, %v324
    %339 = vrot.lane.b32.xlu0 %v336, 96
    %v340 = vpop.permute.xlu0 %339
    %v342 = vmul.f32 %v337, %v340
    %v343 = vmul.f32 %v324, %v289
    %v344 = vadd.f32 %v342, %v343
    %346 = vrot.lane.b32.xlu0 %v344, 96
    %v347 = vpop.permute.xlu0 %346
    %s349 = scalar_lea.vmem [#allocation2], 8
    %350 = vst.msk [vmem:[%s349] sm:$0x3] %vm129, %v347
    %s351 = scalar_lea.vmem %s0, 10
    %v352 = vld [vmem:[%s351] sm:$0x3]
    %v353 = vsel %vm73, %v347, 0
    %355 = vmatpush.msra.mxu0 0.0
    %356 = vmatpush.msra.mxu0 0.0
    %357 = vmatpush.msra.mxu0 0.0
    %358 = vmatpush.msra.mxu0 0.0
    %359 = vmatpush.msra.mxu0 0.0
    %360 = vmatpush.msra.mxu0 0.0
    %361 = vmatpush.msra.mxu0 0.0
    %362 = vmatpush.msra.mxu0 0.0
    %363 = vmatpush.msra.mxu0 0.0
    %364 = vmatpush.msra.mxu0 0.0
    %365 = vmatpush.msra.mxu0 0.0
    %366 = vmatpush.msra.mxu0 0.0
    %367 = vmatpush.msra.mxu0 %v68
    %368 = vmatpush.msra.mxu0 %v67
    %369 = vmatpush.msra.mxu0 %v66
    %370 = vmatpush.msra.mxu0 %v65
    %371 = vmatmul.f32.gmra.mxu0 %v353
    %v372 = vpop.f32.mrf.mxu0
    %v373 = vadd.f32 0.0, %v372
    %374 = vdwg.mxu0
    %v375 = vadd.f32 %v352, %v373
    %v376 = vmul.f32 %v375, 0.5
    %v377 = vtanh.pop %v376
    %v378 = vmul.f32 %v377, 0.5
    %v379 = vadd.f32 %v378, 0.5
    %v380 = vadd.f32 %v373, %v103
    %382 = vrot.lane.b32.xlu0 %v380, 64
    %v383 = vpop.permute.xlu0 %382
    %v385 = vmul.f32 %v379, %v383
    %387 = vrot.lane.b32.xlu0 %v385, 64
    %v388 = vpop.permute.xlu0 %387
    %v390 = vadd.f32 %v352, %v388
    %v391 = vtanh.pop %v390
    %v392 = vsub.f32 1.0, %v379
    %394 = vrot.lane.b32.xlu0 %v391, 96
    %v395 = vpop.permute.xlu0 %394
    %v397 = vmul.f32 %v392, %v395
    %v398 = vmul.f32 %v379, %v344
    %v399 = vadd.f32 %v397, %v398
    %401 = vrot.lane.b32.xlu0 %v399, 96
    %v402 = vpop.permute.xlu0 %401
    %s404 = scalar_lea.vmem [#allocation2], 10
    %405 = vst.msk [vmem:[%s404] sm:$0x3] %vm129, %v402
    %s406 = scalar_lea.vmem %s0, 12
    %v407 = vld [vmem:[%s406] sm:$0x3]
    %v408 = vsel %vm73, %v402, 0
    %410 = vmatpush.msra.mxu0 0.0
    %411 = vmatpush.msra.mxu0 0.0
    %412 = vmatpush.msra.mxu0 0.0
    %413 = vmatpush.msra.mxu0 0.0
    %414 = vmatpush.msra.mxu0 0.0
    %415 = vmatpush.msra.mxu0 0.0
    %416 = vmatpush.msra.mxu0 0.0
    %417 = vmatpush.msra.mxu0 0.0
    %418 = vmatpush.msra.mxu0 0.0
    %419 = vmatpush.msra.mxu0 0.0
    %420 = vmatpush.msra.mxu0 0.0
    %421 = vmatpush.msra.mxu0 0.0
    %422 = vmatpush.msra.mxu0 %v68
    %423 = vmatpush.msra.mxu0 %v67
    %424 = vmatpush.msra.mxu0 %v66
    %425 = vmatpush.msra.mxu0 %v65
    %426 = vmatmul.f32.gmra.mxu0 %v408
    %v427 = vpop.f32.mrf.mxu0
    %v428 = vadd.f32 0.0, %v427
    %429 = vdwg.mxu0
    %v430 = vadd.f32 %v407, %v428
    %v431 = vmul.f32 %v430, 0.5
    %v432 = vtanh.pop %v431
    %v433 = vmul.f32 %v432, 0.5
    %v434 = vadd.f32 %v433, 0.5
    %v435 = vadd.f32 %v428, %v103
    %437 = vrot.lane.b32.xlu0 %v435, 64
    %v438 = vpop.permute.xlu0 %437
    %v440 = vmul.f32 %v434, %v438
    %442 = vrot.lane.b32.xlu0 %v440, 64
    %v443 = vpop.permute.xlu0 %442
    %v445 = vadd.f32 %v407, %v443
    %v446 = vtanh.pop %v445
    %v447 = vsub.f32 1.0, %v434
    %449 = vrot.lane.b32.xlu0 %v446, 96
    %v450 = vpop.permute.xlu0 %449
    %v452 = vmul.f32 %v447, %v450
    %v453 = vmul.f32 %v434, %v399
    %v454 = vadd.f32 %v452, %v453
    %456 = vrot.lane.b32.xlu0 %v454, 96
    %v457 = vpop.permute.xlu0 %456
    %s459 = scalar_lea.vmem [#allocation2], 12
    %460 = vst.msk [vmem:[%s459] sm:$0x3] %vm129, %v457
    %s461 = scalar_lea.vmem %s0, 14
    %v462 = vld [vmem:[%s461] sm:$0x3]
    %v463 = vsel %vm73, %v457, 0
    %465 = vmatpush.msra.mxu0 0.0
    %466 = vmatpush.msra.mxu0 0.0
    %467 = vmatpush.msra.mxu0 0.0
    %468 = vmatpush.msra.mxu0 0.0
    %469 = vmatpush.msra.mxu0 0.0
    %470 = vmatpush.msra.mxu0 0.0
    %471 = vmatpush.msra.mxu0 0.0
    %472 = vmatpush.msra.mxu0 0.0
    %473 = vmatpush.msra.mxu0 0.0
    %474 = vmatpush.msra.mxu0 0.0
    %475 = vmatpush.msra.mxu0 0.0
    %476 = vmatpush.msra.mxu0 0.0
    %477 = vmatpush.msra.mxu0 %v68
    %478 = vmatpush.msra.mxu0 %v67
    %479 = vmatpush.msra.mxu0 %v66
    %480 = vmatpush.msra.mxu0 %v65
    %481 = vmatmul.f32.gmra.mxu0 %v463
    %v482 = vpop.f32.mrf.mxu0
    %v483 = vadd.f32 0.0, %v482
    %484 = vdwg.mxu0
    %v485 = vadd.f32 %v462, %v483
    %v486 = vmul.f32 %v485, 0.5
    %v487 = vtanh.pop %v486
    %v488 = vmul.f32 %v487, 0.5
    %v489 = vadd.f32 %v488, 0.5
    %v490 = vadd.f32 %v483, %v103
    %492 = vrot.lane.b32.xlu0 %v490, 64
    %v493 = vpop.permute.xlu0 %492
    %v495 = vmul.f32 %v489, %v493
    %497 = vrot.lane.b32.xlu0 %v495, 64
    %v498 = vpop.permute.xlu0 %497
    %v500 = vadd.f32 %v462, %v498
    %v501 = vtanh.pop %v500
    %v502 = vsub.f32 1.0, %v489
    %504 = vrot.lane.b32.xlu0 %v501, 96
    %v505 = vpop.permute.xlu0 %504
    %v507 = vmul.f32 %v502, %v505
    %v508 = vmul.f32 %v489, %v454
    %v509 = vadd.f32 %v507, %v508
    %511 = vrot.lane.b32.xlu0 %v509, 96
    %v512 = vpop.permute.xlu0 %511
    %s514 = scalar_lea.vmem [#allocation2], 14
    %515 = vst.msk [vmem:[%s514] sm:$0x3] %vm129, %v512
    %v516 = vld [vmem:[#allocation3] sm:$0xff]
    %v517 = vld [vmem:[#allocation3 + $0x8] sm:$0xff]
    %v518 = vld [vmem:[#allocation3 + $0x10] sm:$0xff]
    %v519 = vld [vmem:[#allocation3 + $0x18] sm:$0xff]
    %v520 = vld [vmem:[#allocation6] sm:$0xff]
    %v521 = vld [vmem:[#allocation6 + $0x8] sm:$0xff]
    %v522 = vld [vmem:[#allocation6 + $0x10] sm:$0xff]
    %v523 = vld [vmem:[#allocation6 + $0x18] sm:$0xff]
    %v524 = vld [vmem:[%s5] sm:$0x1]
    %v526 = vperm.slane %v524, 0
    %v528 = vld [vmem:[%s6] sm:$0x1]
    %v530 = vperm.slane %v528, 0
    %v531 = vld [vmem:[#allocation2] sm:$0x3]
    %v533 = vsel %vm73, %v531, 0
    %535 = vmatpush.msra.mxu0 0.0
    %536 = vmatpush.msra.mxu0 0.0
    %537 = vmatpush.msra.mxu0 0.0
    %538 = vmatpush.msra.mxu0 0.0
    %539 = vmatpush.msra.mxu0 0.0
    %540 = vmatpush.msra.mxu0 0.0
    %541 = vmatpush.msra.mxu0 0.0
    %542 = vmatpush.msra.mxu0 0.0
    %543 = vmatpush.msra.mxu0 0.0
    %544 = vmatpush.msra.mxu0 0.0
    %545 = vmatpush.msra.mxu0 0.0
    %546 = vmatpush.msra.mxu0 0.0
    %547 = vmatpush.msra.mxu0 %v519
    %548 = vmatpush.msra.mxu0 %v518
    %549 = vmatpush.msra.mxu0 %v517
    %550 = vmatpush.msra.mxu0 %v516
    %551 = vmatmul.f32.gmra.mxu0 %v533
    %v552 = vpop.f32.mrf.mxu0
    %v553 = vadd.f32 %v526, %v552
    %554 = vdwg.mxu0
    %555 = vmatpush.msra.mxu0 0.0
    %556 = vmatpush.msra.mxu0 0.0
    %557 = vmatpush.msra.mxu0 0.0
    %558 = vmatpush.msra.mxu0 0.0
    %559 = vmatpush.msra.mxu0 0.0
    %560 = vmatpush.msra.mxu0 0.0
    %561 = vmatpush.msra.mxu0 0.0
    %562 = vmatpush.msra.mxu0 0.0
    %563 = vmatpush.msra.mxu0 0.0
    %564 = vmatpush.msra.mxu0 0.0
    %565 = vmatpush.msra.mxu0 0.0
    %566 = vmatpush.msra.mxu0 0.0
    %567 = vmatpush.msra.mxu0 %v523
    %568 = vmatpush.msra.mxu0 %v522
    %569 = vmatpush.msra.mxu0 %v521
    %570 = vmatpush.msra.mxu0 %v520
    %571 = vmatmul.f32.gmra.mxu0 %v75
    %v572 = vpop.f32.mrf.mxu0
    %v573 = vadd.f32 0.0, %v572
    %574 = vdwg.mxu0
    %v575 = vadd.f32 %v553, %v573
    %v576 = vmul.f32 %v575, 0.5
    %v577 = vtanh.pop %v576
    %v578 = vmul.f32 %v577, 0.5
    %v579 = vadd.f32 %v578, 0.5
    %580 = vrot.lane.b32.xlu0 %v530, 64
    %v581 = vpop.permute.xlu0 %580
    %v583 = vadd.f32 %v573, %v581
    %585 = vrot.lane.b32.xlu0 %v583, 64
    %v586 = vpop.permute.xlu0 %585
    %v588 = vmul.f32 %v579, %v586
    %590 = vrot.lane.b32.xlu0 %v588, 64
    %v591 = vpop.permute.xlu0 %590
    %v593 = vadd.f32 %v553, %v591
    %v594 = vtanh.pop %v593
    %v595 = vsub.f32 1.0, %v579
    %597 = vrot.lane.b32.xlu0 %v594, 96
    %v598 = vpop.permute.xlu0 %597
    %v600 = vmul.f32 %v595, %v598
    %v601 = vmul.f32 %v579, 0.0
    %v602 = vadd.f32 %v600, %v601
    %v603 = vld [vmem:[%s184] sm:$0x3]
    %v605 = vsel %vm73, %v603, 0
    %607 = vmatpush.msra.mxu0 0.0
    %608 = vmatpush.msra.mxu0 0.0
    %609 = vmatpush.msra.mxu0 0.0
    %610 = vmatpush.msra.mxu0 0.0
    %611 = vmatpush.msra.mxu0 0.0
    %612 = vmatpush.msra.mxu0 0.0
    %613 = vmatpush.msra.mxu0 0.0
    %614 = vmatpush.msra.mxu0 0.0
    %615 = vmatpush.msra.mxu0 0.0
    %616 = vmatpush.msra.mxu0 0.0
    %617 = vmatpush.msra.mxu0 0.0
    %618 = vmatpush.msra.mxu0 0.0
    %619 = vmatpush.msra.mxu0 %v519
    %620 = vmatpush.msra.mxu0 %v518
    %621 = vmatpush.msra.mxu0 %v517
    %622 = vmatpush.msra.mxu0 %v516
    %623 = vmatmul.f32.gmra.mxu0 %v605
    %v624 = vpop.f32.mrf.mxu0
    %v625 = vadd.f32 %v526, %v624
    %626 = vdwg.mxu0
    %628 = vrot.lane.b32.xlu0 %v602, 96
    %v629 = vpop.permute.xlu0 %628
    %v630 = vsel %vm73, %v629, 0
    %632 = vmatpush.msra.mxu0 0.0
    %633 = vmatpush.msra.mxu0 0.0
    %634 = vmatpush.msra.mxu0 0.0
    %635 = vmatpush.msra.mxu0 0.0
    %636 = vmatpush.msra.mxu0 0.0
    %637 = vmatpush.msra.mxu0 0.0
    %638 = vmatpush.msra.mxu0 0.0
    %639 = vmatpush.msra.mxu0 0.0
    %640 = vmatpush.msra.mxu0 0.0
    %641 = vmatpush.msra.mxu0 0.0
    %642 = vmatpush.msra.mxu0 0.0
    %643 = vmatpush.msra.mxu0 0.0
    %644 = vmatpush.msra.mxu0 %v523
    %645 = vmatpush.msra.mxu0 %v522
    %646 = vmatpush.msra.mxu0 %v521
    %647 = vmatpush.msra.mxu0 %v520
    %648 = vmatmul.f32.gmra.mxu0 %v630
    %v649 = vpop.f32.mrf.mxu0
    %v650 = vadd.f32 0.0, %v649
    %651 = vdwg.mxu0
    %v652 = vadd.f32 %v625, %v650
    %v653 = vmul.f32 %v652, 0.5
    %v654 = vtanh.pop %v653
    %v655 = vmul.f32 %v654, 0.5
    %v656 = vadd.f32 %v655, 0.5
    %v657 = vadd.f32 %v650, %v581
    %659 = vrot.lane.b32.xlu0 %v657, 64
    %v660 = vpop.permute.xlu0 %659
    %v662 = vmul.f32 %v656, %v660
    %664 = vrot.lane.b32.xlu0 %v662, 64
    %v665 = vpop.permute.xlu0 %664
    %v667 = vadd.f32 %v625, %v665
    %v668 = vtanh.pop %v667
    %v669 = vsub.f32 1.0, %v656
    %671 = vrot.lane.b32.xlu0 %v668, 96
    %v672 = vpop.permute.xlu0 %671
    %v674 = vmul.f32 %v669, %v672
    %v675 = vmul.f32 %v656, %v602
    %v676 = vadd.f32 %v674, %v675
    %v677 = vld [vmem:[%s239] sm:$0x3]
    %v679 = vsel %vm73, %v677, 0
    %681 = vmatpush.msra.mxu0 0.0
    %682 = vmatpush.msra.mxu0 0.0
    %683 = vmatpush.msra.mxu0 0.0
    %684 = vmatpush.msra.mxu0 0.0
    %685 = vmatpush.msra.mxu0 0.0
    %686 = vmatpush.msra.mxu0 0.0
    %687 = vmatpush.msra.mxu0 0.0
    %688 = vmatpush.msra.mxu0 0.0
    %689 = vmatpush.msra.mxu0 0.0
    %690 = vmatpush.msra.mxu0 0.0
    %691 = vmatpush.msra.mxu0 0.0
    %692 = vmatpush.msra.mxu0 0.0
    %693 = vmatpush.msra.mxu0 %v519
    %694 = vmatpush.msra.mxu0 %v518
    %695 = vmatpush.msra.mxu0 %v517
    %696 = vmatpush.msra.mxu0 %v516
    %697 = vmatmul.f32.gmra.mxu0 %v679
    %v698 = vpop.f32.mrf.mxu0
    %v699 = vadd.f32 %v526, %v698
    %700 = vdwg.mxu0
    %702 = vrot.lane.b32.xlu0 %v676, 96
    %v703 = vpop.permute.xlu0 %702
    %v704 = vsel %vm73, %v703, 0
    %706 = vmatpush.msra.mxu0 0.0
    %707 = vmatpush.msra.mxu0 0.0
    %708 = vmatpush.msra.mxu0 0.0
    %709 = vmatpush.msra.mxu0 0.0
    %710 = vmatpush.msra.mxu0 0.0
    %711 = vmatpush.msra.mxu0 0.0
    %712 = vmatpush.msra.mxu0 0.0
    %713 = vmatpush.msra.mxu0 0.0
    %714 = vmatpush.msra.mxu0 0.0
    %715 = vmatpush.msra.mxu0 0.0
    %716 = vmatpush.msra.mxu0 0.0
    %717 = vmatpush.msra.mxu0 0.0
    %718 = vmatpush.msra.mxu0 %v523
    %719 = vmatpush.msra.mxu0 %v522
    %720 = vmatpush.msra.mxu0 %v521
    %721 = vmatpush.msra.mxu0 %v520
    %722 = vmatmul.f32.gmra.mxu0 %v704
    %v723 = vpop.f32.mrf.mxu0
    %v724 = vadd.f32 0.0, %v723
    %725 = vdwg.mxu0
    %v726 = vadd.f32 %v699, %v724
    %v727 = vmul.f32 %v726, 0.5
    %v728 = vtanh.pop %v727
    %v729 = vmul.f32 %v728, 0.5
    %v730 = vadd.f32 %v729, 0.5
    %v731 = vadd.f32 %v724, %v581
    %733 = vrot.lane.b32.xlu0 %v731, 64
    %v734 = vpop.permute.xlu0 %733
    %v736 = vmul.f32 %v730, %v734
    %738 = vrot.lane.b32.xlu0 %v736, 64
    %v739 = vpop.permute.xlu0 %738
    %v741 = vadd.f32 %v699, %v739
    %v742 = vtanh.pop %v741
    %v743 = vsub.f32 1.0, %v730
    %745 = vrot.lane.b32.xlu0 %v742, 96
    %v746 = vpop.permute.xlu0 %745
    %v748 = vmul.f32 %v743, %v746
    %v749 = vmul.f32 %v730, %v676
    %v750 = vadd.f32 %v748, %v749
    %v751 = vld [vmem:[%s294] sm:$0x3]
    %v753 = vsel %vm73, %v751, 0
    %755 = vmatpush.msra.mxu0 0.0
    %756 = vmatpush.msra.mxu0 0.0
    %757 = vmatpush.msra.mxu0 0.0
    %758 = vmatpush.msra.mxu0 0.0
    %759 = vmatpush.msra.mxu0 0.0
    %760 = vmatpush.msra.mxu0 0.0
    %761 = vmatpush.msra.mxu0 0.0
    %762 = vmatpush.msra.mxu0 0.0
    %763 = vmatpush.msra.mxu0 0.0
    %764 = vmatpush.msra.mxu0 0.0
    %765 = vmatpush.msra.mxu0 0.0
    %766 = vmatpush.msra.mxu0 0.0
    %767 = vmatpush.msra.mxu0 %v519
    %768 = vmatpush.msra.mxu0 %v518
    %769 = vmatpush.msra.mxu0 %v517
    %770 = vmatpush.msra.mxu0 %v516
    %771 = vmatmul.f32.gmra.mxu0 %v753
    %v772 = vpop.f32.mrf.mxu0
    %v773 = vadd.f32 %v526, %v772
    %774 = vdwg.mxu0
    %776 = vrot.lane.b32.xlu0 %v750, 96
    %v777 = vpop.permute.xlu0 %776
    %v778 = vsel %vm73, %v777, 0
    %780 = vmatpush.msra.mxu0 0.0
    %781 = vmatpush.msra.mxu0 0.0
    %782 = vmatpush.msra.mxu0 0.0
    %783 = vmatpush.msra.mxu0 0.0
    %784 = vmatpush.msra.mxu0 0.0
    %785 = vmatpush.msra.mxu0 0.0
    %786 = vmatpush.msra.mxu0 0.0
    %787 = vmatpush.msra.mxu0 0.0
    %788 = vmatpush.msra.mxu0 0.0
    %789 = vmatpush.msra.mxu0 0.0
    %790 = vmatpush.msra.mxu0 0.0
    %791 = vmatpush.msra.mxu0 0.0
    %792 = vmatpush.msra.mxu0 %v523
    %793 = vmatpush.msra.mxu0 %v522
    %794 = vmatpush.msra.mxu0 %v521
    %795 = vmatpush.msra.mxu0 %v520
    %796 = vmatmul.f32.gmra.mxu0 %v778
    %v797 = vpop.f32.mrf.mxu0
    %v798 = vadd.f32 0.0, %v797
    %799 = vdwg.mxu0
    %v800 = vadd.f32 %v773, %v798
    %v801 = vmul.f32 %v800, 0.5
    %v802 = vtanh.pop %v801
    %v803 = vmul.f32 %v802, 0.5
    %v804 = vadd.f32 %v803, 0.5
    %v805 = vadd.f32 %v798, %v581
    %807 = vrot.lane.b32.xlu0 %v805, 64
    %v808 = vpop.permute.xlu0 %807
    %v810 = vmul.f32 %v804, %v808
    %812 = vrot.lane.b32.xlu0 %v810, 64
    %v813 = vpop.permute.xlu0 %812
    %v815 = vadd.f32 %v773, %v813
    %v816 = vtanh.pop %v815
    %v817 = vsub.f32 1.0, %v804
    %819 = vrot.lane.b32.xlu0 %v816, 96
    %v820 = vpop.permute.xlu0 %819
    %v822 = vmul.f32 %v817, %v820
    %v823 = vmul.f32 %v804, %v750
    %v824 = vadd.f32 %v822, %v823
    %v825 = vld [vmem:[%s349] sm:$0x3]
    %v827 = vsel %vm73, %v825, 0
    %829 = vmatpush.msra.mxu0 0.0
    %830 = vmatpush.msra.mxu0 0.0
    %831 = vmatpush.msra.mxu0 0.0
    %832 = vmatpush.msra.mxu0 0.0
    %833 = vmatpush.msra.mxu0 0.0
    %834 = vmatpush.msra.mxu0 0.0
    %835 = vmatpush.msra.mxu0 0.0
    %836 = vmatpush.msra.mxu0 0.0
    %837 = vmatpush.msra.mxu0 0.0
    %838 = vmatpush.msra.mxu0 0.0
    %839 = vmatpush.msra.mxu0 0.0
    %840 = vmatpush.msra.mxu0 0.0
    %841 = vmatpush.msra.mxu0 %v519
    %842 = vmatpush.msra.mxu0 %v518
    %843 = vmatpush.msra.mxu0 %v517
    %844 = vmatpush.msra.mxu0 %v516
    %845 = vmatmul.f32.gmra.mxu0 %v827
    %v846 = vpop.f32.mrf.mxu0
    %v847 = vadd.f32 %v526, %v846
    %848 = vdwg.mxu0
    %850 = vrot.lane.b32.xlu0 %v824, 96
    %v851 = vpop.permute.xlu0 %850
    %v852 = vsel %vm73, %v851, 0
    %854 = vmatpush.msra.mxu0 0.0
    %855 = vmatpush.msra.mxu0 0.0
    %856 = vmatpush.msra.mxu0 0.0
    %857 = vmatpush.msra.mxu0 0.0
    %858 = vmatpush.msra.mxu0 0.0
    %859 = vmatpush.msra.mxu0 0.0
    %860 = vmatpush.msra.mxu0 0.0
    %861 = vmatpush.msra.mxu0 0.0
    %862 = vmatpush.msra.mxu0 0.0
    %863 = vmatpush.msra.mxu0 0.0
    %864 = vmatpush.msra.mxu0 0.0
    %865 = vmatpush.msra.mxu0 0.0
    %866 = vmatpush.msra.mxu0 %v523
    %867 = vmatpush.msra.mxu0 %v522
    %868 = vmatpush.msra.mxu0 %v521
    %869 = vmatpush.msra.mxu0 %v520
    %870 = vmatmul.f32.gmra.mxu0 %v852
    %v871 = vpop.f32.mrf.mxu0
    %v872 = vadd.f32 0.0, %v871
    %873 = vdwg.mxu0
    %v874 = vadd.f32 %v847, %v872
    %v875 = vmul.f32 %v874, 0.5
    %v876 = vtanh.pop %v875
    %v877 = vmul.f32 %v876, 0.5
    %v878 = vadd.f32 %v877, 0.5
    %v879 = vadd.f32 %v872, %v581
    %881 = vrot.lane.b32.xlu0 %v879, 64
    %v882 = vpop.permute.xlu0 %881
    %v884 = vmul.f32 %v878, %v882
    %886 = vrot.lane.b32.xlu0 %v884, 64
    %v887 = vpop.permute.xlu0 %886
    %v889 = vadd.f32 %v847, %v887
    %v890 = vtanh.pop %v889
    %v891 = vsub.f32 1.0, %v878
    %893 = vrot.lane.b32.xlu0 %v890, 96
    %v894 = vpop.permute.xlu0 %893
    %v896 = vmul.f32 %v891, %v894
    %v897 = vmul.f32 %v878, %v824
    %v898 = vadd.f32 %v896, %v897
    %v899 = vld [vmem:[%s404] sm:$0x3]
    %v901 = vsel %vm73, %v899, 0
    %903 = vmatpush.msra.mxu0 0.0
    %904 = vmatpush.msra.mxu0 0.0
    %905 = vmatpush.msra.mxu0 0.0
    %906 = vmatpush.msra.mxu0 0.0
    %907 = vmatpush.msra.mxu0 0.0
    %908 = vmatpush.msra.mxu0 0.0
    %909 = vmatpush.msra.mxu0 0.0
    %910 = vmatpush.msra.mxu0 0.0
    %911 = vmatpush.msra.mxu0 0.0
    %912 = vmatpush.msra.mxu0 0.0
    %913 = vmatpush.msra.mxu0 0.0
    %914 = vmatpush.msra.mxu0 0.0
    %915 = vmatpush.msra.mxu0 %v519
    %916 = vmatpush.msra.mxu0 %v518
    %917 = vmatpush.msra.mxu0 %v517
    %918 = vmatpush.msra.mxu0 %v516
    %919 = vmatmul.f32.gmra.mxu0 %v901
    %v920 = vpop.f32.mrf.mxu0
    %v921 = vadd.f32 %v526, %v920
    %922 = vdwg.mxu0
    %924 = vrot.lane.b32.xlu0 %v898, 96
    %v925 = vpop.permute.xlu0 %924
    %v926 = vsel %vm73, %v925, 0
    %928 = vmatpush.msra.mxu0 0.0
    %929 = vmatpush.msra.mxu0 0.0
    %930 = vmatpush.msra.mxu0 0.0
    %931 = vmatpush.msra.mxu0 0.0
    %932 = vmatpush.msra.mxu0 0.0
    %933 = vmatpush.msra.mxu0 0.0
    %934 = vmatpush.msra.mxu0 0.0
    %935 = vmatpush.msra.mxu0 0.0
    %936 = vmatpush.msra.mxu0 0.0
    %937 = vmatpush.msra.mxu0 0.0
    %938 = vmatpush.msra.mxu0 0.0
    %939 = vmatpush.msra.mxu0 0.0
    %940 = vmatpush.msra.mxu0 %v523
    %941 = vmatpush.msra.mxu0 %v522
    %942 = vmatpush.msra.mxu0 %v521
    %943 = vmatpush.msra.mxu0 %v520
    %944 = vmatmul.f32.gmra.mxu0 %v926
    %v945 = vpop.f32.mrf.mxu0
    %v946 = vadd.f32 0.0, %v945
    %947 = vdwg.mxu0
    %v948 = vadd.f32 %v921, %v946
    %v949 = vmul.f32 %v948, 0.5
    %v950 = vtanh.pop %v949
    %v951 = vmul.f32 %v950, 0.5
    %v952 = vadd.f32 %v951, 0.5
    %v953 = vadd.f32 %v946, %v581
    %955 = vrot.lane.b32.xlu0 %v953, 64
    %v956 = vpop.permute.xlu0 %955
    %v958 = vmul.f32 %v952, %v956
    %960 = vrot.lane.b32.xlu0 %v958, 64
    %v961 = vpop.permute.xlu0 %960
    %v963 = vadd.f32 %v921, %v961
    %v964 = vtanh.pop %v963
    %v965 = vsub.f32 1.0, %v952
    %967 = vrot.lane.b32.xlu0 %v964, 96
    %v968 = vpop.permute.xlu0 %967
    %v970 = vmul.f32 %v965, %v968
    %v971 = vmul.f32 %v952, %v898
    %v972 = vadd.f32 %v970, %v971
    %v973 = vld [vmem:[%s459] sm:$0x3]
    %v975 = vsel %vm73, %v973, 0
    %977 = vmatpush.msra.mxu0 0.0
    %978 = vmatpush.msra.mxu0 0.0
    %979 = vmatpush.msra.mxu0 0.0
    %980 = vmatpush.msra.mxu0 0.0
    %981 = vmatpush.msra.mxu0 0.0
    %982 = vmatpush.msra.mxu0 0.0
    %983 = vmatpush.msra.mxu0 0.0
    %984 = vmatpush.msra.mxu0 0.0
    %985 = vmatpush.msra.mxu0 0.0
    %986 = vmatpush.msra.mxu0 0.0
    %987 = vmatpush.msra.mxu0 0.0
    %988 = vmatpush.msra.mxu0 0.0
    %989 = vmatpush.msra.mxu0 %v519
    %990 = vmatpush.msra.mxu0 %v518
    %991 = vmatpush.msra.mxu0 %v517
    %992 = vmatpush.msra.mxu0 %v516
    %993 = vmatmul.f32.gmra.mxu0 %v975
    %v994 = vpop.f32.mrf.mxu0
    %v995 = vadd.f32 %v526, %v994
    %996 = vdwg.mxu0
    %998 = vrot.lane.b32.xlu0 %v972, 96
    %v999 = vpop.permute.xlu0 %998
    %v1000 = vsel %vm73, %v999, 0
    %1002 = vmatpush.msra.mxu0 0.0
    %1003 = vmatpush.msra.mxu0 0.0
    %1004 = vmatpush.msra.mxu0 0.0
    %1005 = vmatpush.msra.mxu0 0.0
    %1006 = vmatpush.msra.mxu0 0.0
    %1007 = vmatpush.msra.mxu0 0.0
    %1008 = vmatpush.msra.mxu0 0.0
    %1009 = vmatpush.msra.mxu0 0.0
    %1010 = vmatpush.msra.mxu0 0.0
    %1011 = vmatpush.msra.mxu0 0.0
    %1012 = vmatpush.msra.mxu0 0.0
    %1013 = vmatpush.msra.mxu0 0.0
    %1014 = vmatpush.msra.mxu0 %v523
    %1015 = vmatpush.msra.mxu0 %v522
    %1016 = vmatpush.msra.mxu0 %v521
    %1017 = vmatpush.msra.mxu0 %v520
    %1018 = vmatmul.f32.gmra.mxu0 %v1000
    %v1019 = vpop.f32.mrf.mxu0
    %v1020 = vadd.f32 0.0, %v1019
    %1021 = vdwg.mxu0
    %v1022 = vadd.f32 %v995, %v1020
    %v1023 = vmul.f32 %v1022, 0.5
    %v1024 = vtanh.pop %v1023
    %v1025 = vmul.f32 %v1024, 0.5
    %v1026 = vadd.f32 %v1025, 0.5
    %v1027 = vadd.f32 %v1020, %v581
    %1029 = vrot.lane.b32.xlu0 %v1027, 64
    %v1030 = vpop.permute.xlu0 %1029
    %v1032 = vmul.f32 %v1026, %v1030
    %1034 = vrot.lane.b32.xlu0 %v1032, 64
    %v1035 = vpop.permute.xlu0 %1034
    %v1037 = vadd.f32 %v995, %v1035
    %v1038 = vtanh.pop %v1037
    %v1039 = vsub.f32 1.0, %v1026
    %1041 = vrot.lane.b32.xlu0 %v1038, 96
    %v1042 = vpop.permute.xlu0 %1041
    %v1044 = vmul.f32 %v1039, %v1042
    %v1045 = vmul.f32 %v1026, %v972
    %v1046 = vadd.f32 %v1044, %v1045
    %v1047 = vld [vmem:[%s514] sm:$0x3]
    %v1049 = vsel %vm73, %v1047, 0
    %1051 = vmatpush.msra.mxu0 0.0
    %1052 = vmatpush.msra.mxu0 0.0
    %1053 = vmatpush.msra.mxu0 0.0
    %1054 = vmatpush.msra.mxu0 0.0
    %1055 = vmatpush.msra.mxu0 0.0
    %1056 = vmatpush.msra.mxu0 0.0
    %1057 = vmatpush.msra.mxu0 0.0
    %1058 = vmatpush.msra.mxu0 0.0
    %1059 = vmatpush.msra.mxu0 0.0
    %1060 = vmatpush.msra.mxu0 0.0
    %1061 = vmatpush.msra.mxu0 0.0
    %1062 = vmatpush.msra.mxu0 0.0
    %1063 = vmatpush.msra.mxu0 %v519
    %1064 = vmatpush.msra.mxu0 %v518
    %1065 = vmatpush.msra.mxu0 %v517
    %1066 = vmatpush.msra.mxu0 %v516
    %1067 = vmatmul.f32.gmra.mxu0 %v1049
    %v1068 = vpop.f32.mrf.mxu0
    %v1069 = vadd.f32 %v526, %v1068
    %1070 = vdwg.mxu0
    %1072 = vrot.lane.b32.xlu0 %v1046, 96
    %v1073 = vpop.permute.xlu0 %1072
    %v1074 = vsel %vm73, %v1073, 0
    %1076 = vmatpush.msra.mxu0 0.0
    %1077 = vmatpush.msra.mxu0 0.0
    %1078 = vmatpush.msra.mxu0 0.0
    %1079 = vmatpush.msra.mxu0 0.0
    %1080 = vmatpush.msra.mxu0 0.0
    %1081 = vmatpush.msra.mxu0 0.0
    %1082 = vmatpush.msra.mxu0 0.0
    %1083 = vmatpush.msra.mxu0 0.0
    %1084 = vmatpush.msra.mxu0 0.0
    %1085 = vmatpush.msra.mxu0 0.0
    %1086 = vmatpush.msra.mxu0 0.0
    %1087 = vmatpush.msra.mxu0 0.0
    %1088 = vmatpush.msra.mxu0 %v523
    %1089 = vmatpush.msra.mxu0 %v522
    %1090 = vmatpush.msra.mxu0 %v521
    %1091 = vmatpush.msra.mxu0 %v520
    %1092 = vmatmul.f32.gmra.mxu0 %v1074
    %v1093 = vpop.f32.mrf.mxu0
    %v1094 = vadd.f32 0.0, %v1093
    %1095 = vdwg.mxu0
    %v1096 = vadd.f32 %v1069, %v1094
    %v1097 = vmul.f32 %v1096, 0.5
    %v1098 = vtanh.pop %v1097
    %v1099 = vmul.f32 %v1098, 0.5
    %v1100 = vadd.f32 %v1099, 0.5
    %v1101 = vadd.f32 %v1094, %v581
    %1103 = vrot.lane.b32.xlu0 %v1101, 64
    %v1104 = vpop.permute.xlu0 %1103
    %v1106 = vmul.f32 %v1100, %v1104
    %1108 = vrot.lane.b32.xlu0 %v1106, 64
    %v1109 = vpop.permute.xlu0 %1108
    %v1111 = vadd.f32 %v1069, %v1109
    %v1112 = vtanh.pop %v1111
    %v1113 = vsub.f32 1.0, %v1100
    %1115 = vrot.lane.b32.xlu0 %v1112, 96
    %v1116 = vpop.permute.xlu0 %1115
    %v1118 = vmul.f32 %v1113, %v1116
    %v1119 = vmul.f32 %v1100, %v1046
    %v1120 = vadd.f32 %v1118, %v1119
    %v1121 = vld [vmem:[%s7] sm:$0xff]
    %v1122 = vld [vmem:[%s7 + $0x8] sm:$0xff]
    %v1123 = vld [vmem:[%s7 + $0x10] sm:$0xff]
    %v1124 = vld [vmem:[%s7 + $0x18] sm:$0xff]
    %v1125 = vld [vmem:[%s8] sm:$0x1]
    %v1127 = vperm.slane %v1125, 0
    %1130 = vrot.lane.b32.xlu0 %v1120, 96
    %v1131 = vpop.permute.xlu0 %1130
    %v1132 = vsel %vm73, %v1131, 0
    %1134 = vmatpush.msra.mxu0 0.0
    %1135 = vmatpush.msra.mxu0 0.0
    %1136 = vmatpush.msra.mxu0 0.0
    %1137 = vmatpush.msra.mxu0 0.0
    %1138 = vmatpush.msra.mxu0 0.0
    %1139 = vmatpush.msra.mxu0 0.0
    %1140 = vmatpush.msra.mxu0 0.0
    %1141 = vmatpush.msra.mxu0 0.0
    %1142 = vmatpush.msra.mxu0 0.0
    %1143 = vmatpush.msra.mxu0 0.0
    %1144 = vmatpush.msra.mxu0 0.0
    %1145 = vmatpush.msra.mxu0 0.0
    %1146 = vmatpush.msra.mxu0 %v1124
    %1147 = vmatpush.msra.mxu0 %v1123
    %1148 = vmatpush.msra.mxu0 %v1122
    %1149 = vmatpush.msra.mxu0 %v1121
    %1150 = vmatmul.f32.gmra.mxu0 %v1132
    %v1151 = vpop.f32.mrf.mxu0
    %v1152 = vadd.f32 %v1127, %v1151
    %1153 = vdwg.mxu0
    %vm1154 = vcmask 74752
    %1155 = vst.msk [vmem:[#allocation8] sm:$0x3] %vm1154, %v1152
    // Predicated region
    $region46: #{gru_model_forward.1} parent=1 // pred_check
      _
    $region47: #{gru_model_forward.1} parent=1 // pred_check_branch
      %1157 = sbr.rel (0) target = $region49
    $region48: #{gru_model_forward.1} parent=1 // pred_region
      %1159 = vsyncadd [#allocation5], 0
      %s1161 = sshll.u32 [#allocation8], 4
      %s1162 = int_to_ptr.vmem [resolvable:$true] %s1161
      %s1163 = sshll.u32 %s9, 4
      %s1164 = int_to_ptr.hbm [resolvable:$true] %s1163
      %1166 = dma.vmem_to_hbm [thread:$0]  %s1162, 32, %s1164, [#allocation5]
    $region49: #{gru_model_forward.1} parent=1 // pred_fallthru
      _
    // Predicated region
    $region50: #{gru_model_forward.1} parent=1 // pred_check
      _
    $region51: #{gru_model_forward.1} parent=1 // pred_check_branch
      %1168 = sbr.rel (0) target = $region53
    $region52: #{gru_model_forward.1} parent=1 // pred_region
      %1170 = dma.done [#allocation5], 32
    $region53: #{gru_model_forward.1} parent=1 // pred_fallthru
      _
    %1171 = vsyncpa [#allocation4], 1
    %1172 = vsyncpa [#allocation7], 1
    %1173 = vsyncpa [#allocation5], 1

</llo_original>
